<compile_context>
chip_gen: v7x
topology: tpu7x:2x2x1
jax: 0.10.0
libtpu: 0.0.40
codegen_flags: <defaults>
</compile_context>

<pallas_src>
import functools

import jax
import jax.numpy as jnp
from jax.experimental import pallas as pl
from jax.experimental.pallas import tpu as pltpu

BN_EPS = 1e-5     # torch.nn.BatchNorm1d default eps
GIN_EPS = 0.01    # GIN_test hard-codes eps=0.01 (train_eps irrelevant at eval)


# ---------------- tiling ------------------------------------------------------

def _tile_for(n):
    """Largest power-of-two tile in [128, 1024] that still yields >=2 row tiles
    (v7x megacore split) and keeps the adj double-buffers inside v5e's default
    scoped-VMEM budget.  For n <= 128 there is only one tile anyway."""
    tile = 128
    while tile < 1024 and tile * 4 <= n:
        tile *= 2
    return tile


# ---------------- Kernel A: fused GIN block (agg + MLP + sum pool) -----------

def _gin_block_kernel(koff_ref, kcnt_ref, adj_ref, xk_ref, seg_ref,
                      w1_ref, b1_ref, w2_ref, b2_ref,
                      out_ref, acc_ref, *, one_plus_eps):
    i = pl.program_id(0)
    k = pl.program_id(1)
    kcnt = kcnt_ref[i]
    kb = koff_ref[i] + k          # actual adj column block when k < kcnt

    @pl.when(k == 0)
    def _():
        acc_ref[...] = jnp.zeros_like(acc_ref)

    @pl.when(k < kcnt)
    def _():
        # neighbor sum: A[row_tile, col_tile] @ x[col_tile]  (bf16 ops, f32 acc)
        acc_ref[...] += jnp.dot(adj_ref[...], xk_ref[...],
                                preferred_element_type=jnp.float32)

        # GINConv self term (1 + eps) * x, added when the diagonal block streams
        @pl.when(kb == i)
        def _():
            acc_ref[...] += one_plus_eps * xk_ref[...].astype(jnp.float32)

    # last in-band step for this row tile: MLP + per-tile graph sum pool
    @pl.when(k == kcnt - 1)
    def _():
        h = acc_ref[...]
        # conv MLP: two Linear+BN+ReLU layers (BN folded into W, b)
        y = jnp.dot(h.astype(jnp.bfloat16), w1_ref[...],
                    preferred_element_type=jnp.float32) + b1_ref[...]
        y = jnp.maximum(y, 0.0)
        y = jnp.dot(y.astype(jnp.bfloat16), w2_ref[...],
                    preferred_element_type=jnp.float32) + b2_ref[...]
        y = jnp.maximum(y, 0.0)

        # per-row-tile graph sum pool: mask[g, m] = (batch[m] == g)
        g = out_ref.shape[1]
        tm = seg_ref.shape[1]
        mask = (seg_ref[...] ==
                jax.lax.broadcasted_iota(jnp.int32, (g, tm), 0)
                ).astype(jnp.bfloat16)
        out_ref[...] = jnp.dot(mask, y.astype(jnp.bfloat16),
                               preferred_element_type=jnp.float32)[None]


def gin_block(adj_p, x, seg_p, koff, kcnt, w1, b1, w2, b2, num_graphs, tile):
    """Per-row-tile partial sum-pools of the GINConv MLP output:
    shape [num_row_tiles, num_graphs, hidden]."""
    n_p = adj_p.shape[0]
    assert n_p % tile == 0
    n_i = n_p // tile
    n, h_in = x.shape
    d = w1.shape[1]
    h_out = w2.shape[1]

    # node features: bf16 + pad (O(N*H) only, adj was prepped outside the jit)
    x_p = jnp.pad(x.astype(jnp.bfloat16), ((0, n_p - n), (0, 0)))

    def col_block(i, k, koff, kcnt):
        # clamp to the band so skipped steps revisit the same block (no re-DMA)
        return koff[i] + jnp.minimum(k, kcnt[i] - 1)

    kernel = functools.partial(_gin_block_kernel,
                               one_plus_eps=1.0 + GIN_EPS)
    return pl.pallas_call(
        kernel,
        out_shape=jax.ShapeDtypeStruct((n_i, num_graphs, h_out), jnp.float32),
        grid_spec=pltpu.PrefetchScalarGridSpec(
            num_scalar_prefetch=2,                      # koff, kcnt (SMEM)
            grid=(n_i, n_i),
            in_specs=[
                pl.BlockSpec((tile, tile),
                             lambda i, k, koff, kcnt: (i, col_block(i, k, koff, kcnt))),
                pl.BlockSpec((tile, h_in),
                             lambda i, k, koff, kcnt: (col_block(i, k, koff, kcnt), 0)),
                pl.BlockSpec((1, tile), lambda i, k, koff, kcnt: (0, i)),   # batch ids
                pl.BlockSpec((h_in, d), lambda i, k, koff, kcnt: (0, 0)),   # W1 (BN folded)
                pl.BlockSpec((1, d), lambda i, k, koff, kcnt: (0, 0)),      # b1
                pl.BlockSpec((d, h_out), lambda i, k, koff, kcnt: (0, 0)),  # W2 (BN folded)
                pl.BlockSpec((1, h_out), lambda i, k, koff, kcnt: (0, 0)),  # b2
            ],
            out_specs=pl.BlockSpec((1, num_graphs, h_out),
                                   lambda i, k, koff, kcnt: (i, 0, 0)),
            scratch_shapes=[pltpu.VMEM((tile, h_in), jnp.float32)],
        ),
        compiler_params=pltpu.CompilerParams(
            dimension_semantics=("parallel", "arbitrary")),
    )(koff, kcnt, adj_p, x_p, seg_p, w1, b1, w2, b2)


# ---------------- Kernel B: fused post-pool MLP chain ------------------------

def _post_pool_kernel(part_ref, invc_ref,
                      w1_ref, b1_ref, w2_ref, b2_ref,
                      w3_ref, b3_ref, w4_ref, b4_ref,
                      wf_ref, bf_ref, out_ref):
    # global mean pool: sum of per-row-tile partial sums / node counts
    x = jnp.sum(part_ref[...], axis=0) * invc_ref[...]

    def dense_relu(v, w_ref, b_ref):
        y = jnp.dot(v.astype(jnp.bfloat16), w_ref[...],
                    preferred_element_type=jnp.float32) + b_ref[...]
        return jnp.maximum(y, 0.0)

    x = dense_relu(x, w1_ref, b1_ref)   # lin1[0] + BN + ReLU
    x = dense_relu(x, w2_ref, b2_ref)   # lin1[1] + BN + ReLU (extra F.relu no-op)
    # TODO(synk): dropout implemented as identity (inference mode)
    x = dense_relu(x, w3_ref, b3_ref)   # lin2[0] + BN + ReLU
    x = dense_relu(x, w4_ref, b4_ref)   # lin2[1] + BN + ReLU
    out_ref[...] = (jnp.dot(x.astype(jnp.bfloat16), wf_ref[...],
                            preferred_element_type=jnp.float32) + bf_ref[...])


def post_pool_mlp(partials, inv_counts, layers, final_w, final_b):
    n_i, g, h = partials.shape
    out_dim = final_w.shape[1]

    # tile the graph axis so large graph batches don't blow the VMEM budget
    tg = g if g <= 128 else 128
    if g % tg:
        pad = tg - g % tg
        partials = jnp.pad(partials, ((0, 0), (0, pad), (0, 0)))
        inv_counts = jnp.pad(inv_counts, ((0, pad), (0, 0)))
    g_p = partials.shape[1]

    ins = [partials, inv_counts]
    in_specs = [
        pl.BlockSpec((n_i, tg, h), lambda j: (0, j, 0)),
        pl.BlockSpec((tg, 1), lambda j: (j, 0)),
    ]
    for w, b in layers:
        ins += [w, b]
        in_specs += [pl.BlockSpec(w.shape, lambda j: (0, 0)),
                     pl.BlockSpec(b.shape, lambda j: (0, 0))]
    ins += [final_w, final_b]
    in_specs += [pl.BlockSpec(final_w.shape, lambda j: (0, 0)),
                 pl.BlockSpec(final_b.shape, lambda j: (0, 0))]

    out = pl.pallas_call(
        _post_pool_kernel,
        out_shape=jax.ShapeDtypeStruct((g_p, out_dim), jnp.float32),
        grid_spec=pltpu.PrefetchScalarGridSpec(
            num_scalar_prefetch=0,
            grid=(g_p // tg,),
            in_specs=in_specs,
            out_specs=pl.BlockSpec((tg, out_dim), lambda j: (j, 0)),
        ),
        compiler_params=pltpu.CompilerParams(
            dimension_semantics=("parallel",)),
    )(*ins)
    return out[:g]


# ---------------- one-time graph prep (outside the per-forward jit) ----------

def prepare_graph(adj, batch, num_graphs):
    """Per-batch graph prep done once: bf16 tile-padded adjacency, padded
    segment ids, per-row-tile nonzero column-band offsets/counts, and
    per-graph inverse node counts.  Assumes `batch` is sorted / contiguous
    per graph (standard PyG batching)."""
    n = adj.shape[0]
    tile = _tile_for(n)
    n_p = -(-n // tile) * tile
    pad = n_p - n

    adj_p = jnp.pad(adj.astype(jnp.bfloat16), ((0, pad), (0, pad)))
    seg = jnp.asarray(batch, jnp.int32)
    # padded nodes get segment id == num_graphs -> excluded from the pool mask
    seg_p = jnp.pad(seg, (0, pad), constant_values=num_graphs).reshape(1, n_p)

    # per-graph node ranges (contiguous batch)
    graphs = jnp.arange(num_graphs, dtype=jnp.int32)
    gstart = jnp.searchsorted(seg, graphs, side="left").astype(jnp.int32)
    gend = jnp.searchsorted(seg, graphs, side="right").astype(jnp.int32)

    # per-row-tile band of possibly-nonzero adj column tiles
    n_i = n_p // tile
    row_start = jnp.arange(n_i, dtype=jnp.int32) * tile          # always < n
    row_end = jnp.minimum(row_start + tile, n) - 1
    g_lo = seg[row_start]
    g_hi = seg[row_end]
    col_start = gstart[g_lo]
    col_end = gend[g_hi]
    koff = (col_start // tile).astype(jnp.int32)
    klast = ((col_end - 1) // tile).astype(jnp.int32)
    kcnt = jnp.maximum(klast - koff + 1, 1).astype(jnp.int32)

    # global_mean_pool normalization factors
    counts = jnp.zeros((num_graphs,), jnp.float32).at[seg].add(1.0)
    inv_counts = (1.0 / jnp.maximum(counts, 1.0)).reshape(num_graphs, 1)

    return {"adj": adj_p, "seg": seg_p, "koff": koff, "kcnt": kcnt,
            "inv_counts": inv_counts, "tile": tile}


# ---------------- parameter init + BN folding --------------------------------

def init_linear(key, fan_in, fan_out):
    kw, kb = jax.random.split(key)
    bound = 1.0 / (fan_in ** 0.5)
    w = jax.random.uniform(kw, (fan_in, fan_out), jnp.float32, -bound, bound)
    b = jax.random.uniform(kb, (fan_out,), jnp.float32, -bound, bound)
    return w, b


def init_bn(key, feat):
    k1, k2, k3 = jax.random.split(key, 3)
    gamma = 1.0 + 0.05 * jax.random.normal(k1, (feat,), jnp.float32)
    beta = 0.05 * jax.random.normal(k2, (feat,), jnp.float32)
    mean = 0.05 * jax.random.normal(k3, (feat,), jnp.float32)
    var = jnp.ones((feat,), jnp.float32) * 1.05
    return gamma, beta, mean, var


def init_params(key, num_node_attr, hidden, dense, out_dim):
    keys = jax.random.split(key, 14)
    return {
        "embedding": 0.1 * jax.random.normal(keys[0], (num_node_attr, hidden),
                                             jnp.float32),
        "gin_lin1": init_linear(keys[1], hidden, dense),
        "gin_bn1": init_bn(keys[2], dense),
        "gin_lin2": init_linear(keys[3], dense, hidden),
        "gin_bn2": init_bn(keys[4], hidden),
        "l1_lin1": init_linear(keys[5], hidden, dense),
        "l1_bn1": init_bn(keys[6], dense),
        "l1_lin2": init_linear(keys[7], dense, dense),
        "l1_bn2": init_bn(keys[8], dense),
        "l2_lin1": init_linear(keys[9], dense, dense),
        "l2_bn1": init_bn(keys[10], dense),
        "l2_lin2": init_linear(keys[11], dense, hidden),
        "l2_bn2": init_bn(keys[12], hidden),
        "final": init_linear(keys[13], hidden, out_dim),
    }


def fold_bn(lin, bn):
    """Fold eval-mode BatchNorm1d into the preceding Linear (bf16 W, f32 b)."""
    w, b = lin
    gamma, beta, mean, var = bn
    scale = gamma / jnp.sqrt(var + BN_EPS)
    w_f = (w * scale[None, :]).astype(jnp.bfloat16)
    b_f = ((b - mean) * scale + beta).astype(jnp.float32).reshape(1, -1)
    return w_f, b_f


def prepare_params(p):
    """One-time inference param prep: BN folding + bf16 weight cast."""
    return {
        "embedding": p["embedding"],
        "gin1": fold_bn(p["gin_lin1"], p["gin_bn1"]),
        "gin2": fold_bn(p["gin_lin2"], p["gin_bn2"]),
        "l1a": fold_bn(p["l1_lin1"], p["l1_bn1"]),
        "l1b": fold_bn(p["l1_lin2"], p["l1_bn2"]),
        "l2a": fold_bn(p["l2_lin1"], p["l2_bn1"]),
        "l2b": fold_bn(p["l2_lin2"], p["l2_bn2"]),
        "final_w": p["final"][0].astype(jnp.bfloat16),
        "final_b": p["final"][1].reshape(1, -1).astype(jnp.float32),
    }


# ---------------- full forward (GIN_test.forward) ----------------------------

@functools.partial(jax.jit, static_argnames=("num_graphs", "tile"))
def gin_test_forward(fp, node_attr, adj_p, seg_p, koff, kcnt, inv_counts,
                     num_graphs, tile):
    # node embedding lookup (glue)
    x = jnp.take(fp["embedding"], node_attr, axis=0)

    # fused GINConv block: (1+eps)*x + A@x  ->  MLP  ->  per-row-tile sum pool
    # (the geometric branch in the original module computes the same value and
    #  is only used for an equality assert)
    partials = gin_block(adj_p, x, seg_p, koff, kcnt,
                         fp["gin1"][0], fp["gin1"][1],
                         fp["gin2"][0], fp["gin2"][1],
                         num_graphs=num_graphs, tile=tile)

    # fused: mean-pool finalize + lin1 + (dropout identity) + lin2 + final_lin
    return post_pool_mlp(partials, inv_counts,
                         [fp["l1a"], fp["l1b"], fp["l2a"], fp["l2b"]],
                         fp["final_w"], fp["final_b"])


if __name__ == "__main__":
    key = jax.random.PRNGKey(0)
    k_param, k_attr, k_adj = jax.random.split(key, 3)

    N = 16              # total nodes (2 graphs x 8 nodes each)
    num_graphs = 2
    num_node_attr = 5
    hidden_dim = 32
    dense_dim = 32
    out_dim = 1         # GIN_test default out_dim

    params = init_params(k_param, num_node_attr, hidden_dim, dense_dim, out_dim)
    fp = prepare_params(params)

    node_attr = jax.random.randint(k_attr, (N,), 0, num_node_attr)
    batch = jnp.repeat(jnp.arange(num_graphs), N // num_graphs)

    # random symmetric block-diagonal adjacency, no self loops
    a = jax.random.bernoulli(k_adj, 0.4, (N, N)).astype(jnp.float32)
    a = jnp.triu(a, 1)
    a = a + a.T
    same_graph = (batch[:, None] == batch[None, :]).astype(jnp.float32)
    adj = a * same_graph

    # one-time graph prep (bf16/pad adj, segment ids, adj tile bands, counts)
    g = prepare_graph(adj, batch, num_graphs)

    out = gin_test_forward(fp, node_attr, g["adj"], g["seg"],
                           g["koff"], g["kcnt"], g["inv_counts"],
                           num_graphs=num_graphs, tile=g["tile"])
    jax.block_until_ready(out)
    assert out.shape == (num_graphs, out_dim)
    print("KERNEL_OK")
</pallas_src>

<mosaic_0001>
module attributes {stable_mosaic.version = 11 : i64} {
  func.func @_gin_block_kernel(%arg0: i32, %arg1: i32, %arg2: memref<1xi32, #tpu.memory_space<smem>>, %arg3: memref<1xi32, #tpu.memory_space<smem>>, %arg4: memref<128x128xbf16, #tpu.memory_space<vmem>>, %arg5: memref<128x32xbf16, #tpu.memory_space<vmem>>, %arg6: memref<1x128xi32, #tpu.memory_space<vmem>>, %arg7: memref<32x32xbf16, #tpu.memory_space<vmem>>, %arg8: memref<1x32xf32, #tpu.memory_space<vmem>>, %arg9: memref<32x32xbf16, #tpu.memory_space<vmem>>, %arg10: memref<1x32xf32, #tpu.memory_space<vmem>>, %arg11: memref<1x2x32xf32, #tpu.memory_space<vmem>>, %arg12: memref<128x32xf32, #tpu.memory_space<vmem>>) attributes {dimension_semantics = [#tpu.dimension_semantics<parallel>, #tpu.dimension_semantics<arbitrary>], iteration_bounds = array<i64: 1, 1>, scalar_prefetch = 2 : i64, scratch_operands = 1 : i64, tpu.core_type = #tpu.core_type<tc>, window_params = [{transform_indices = @transform_0, window_bounds = array<i64: 128, 128>}, {transform_indices = @transform_1, window_bounds = array<i64: 128, 32>}, {transform_indices = @transform_2, window_bounds = array<i64: 1, 128>}, {pipeline_mode = #tpu.pipeline_mode<synchronous>, transform_indices = @transform_3, window_bounds = array<i64: 32, 32>}, {pipeline_mode = #tpu.pipeline_mode<synchronous>, transform_indices = @transform_4, window_bounds = array<i64: 1, 32>}, {pipeline_mode = #tpu.pipeline_mode<synchronous>, transform_indices = @transform_5, window_bounds = array<i64: 32, 32>}, {pipeline_mode = #tpu.pipeline_mode<synchronous>, transform_indices = @transform_6, window_bounds = array<i64: 1, 32>}, {transform_indices = @transform_7, window_bounds = array<i64: 1, 2, 32>}]} {
    %0 = arith.index_cast %arg0 : i32 to index
    %1 = memref.load %arg3[%0] : memref<1xi32, #tpu.memory_space<smem>>
    %2 = arith.index_cast %arg0 : i32 to index
    %3 = memref.load %arg2[%2] : memref<1xi32, #tpu.memory_space<smem>>
    %4 = arith.addi %3, %arg1 : i32
    %c0_i32 = arith.constant 0 : i32
    %5 = arith.cmpi eq, %arg1, %c0_i32 : i32
    %6 = arith.extui %5 : i1 to i32
    %c0_i32_0 = arith.constant 0 : i32
    %7 = arith.cmpi ne, %6, %c0_i32_0 : i32
    scf.if %7 {
      %cst = arith.constant 0.000000e+00 : f32
      %15 = vector.broadcast %cst : f32 to vector<128x32xf32>
      %c0 = arith.constant 0 : index
      %c0_3 = arith.constant 0 : index
      %16 = vector.load %arg12[%c0, %c0_3] : memref<128x32xf32, #tpu.memory_space<vmem>>, vector<128x32xf32>
      tpu.vector_store %arg12[%c0, %c0_3], %15 {strides = array<i32>} : memref<128x32xf32, #tpu.memory_space<vmem>>, vector<128x32xf32>,
    } else {
    }
    %8 = arith.cmpi slt, %arg1, %1 : i32
    %9 = arith.extui %8 : i1 to i32
    %c0_i32_1 = arith.constant 0 : i32
    %10 = arith.cmpi ne, %9, %c0_i32_1 : i32
    scf.if %10 {
      %c0 = arith.constant 0 : index
      %c0_3 = arith.constant 0 : index
      %15 = vector.load %arg12[%c0, %c0_3] : memref<128x32xf32, #tpu.memory_space<vmem>>, vector<128x32xf32>
      %c0_4 = arith.constant 0 : index
      %c0_5 = arith.constant 0 : index
      %16 = vector.load %arg4[%c0_4, %c0_5] : memref<128x128xbf16, #tpu.memory_space<vmem>>, vector<128x128xbf16>
      %c0_6 = arith.constant 0 : index
      %c0_7 = arith.constant 0 : index
      %17 = vector.load %arg5[%c0_6, %c0_7] : memref<128x32xbf16, #tpu.memory_space<vmem>>, vector<128x32xbf16>
      %cst = arith.constant dense<0.000000e+00> : vector<128x32xf32>
      %18 = tpu.matmul %16, %17, %cst {dimension_numbers = #tpu.dot_dimension_numbers<[1], [0], [0], [1], [0, 0, 1, 1], [], []>} : vector<128x128xbf16>, vector<128x32xbf16>, vector<128x32xf32> -> vector<128x32xf32>
      %19 = arith.addf %15, %18 : vector<128x32xf32>
      %c0_8 = arith.constant 0 : index
      %c0_9 = arith.constant 0 : index
      %20 = vector.load %arg12[%c0_8, %c0_9] : memref<128x32xf32, #tpu.memory_space<vmem>>, vector<128x32xf32>
      tpu.vector_store %arg12[%c0_8, %c0_9], %19 {strides = array<i32>} : memref<128x32xf32, #tpu.memory_space<vmem>>, vector<128x32xf32>,
      %21 = arith.cmpi eq, %4, %arg0 : i32
      %22 = arith.extui %21 : i1 to i32
      %c0_i32_10 = arith.constant 0 : i32
      %23 = arith.cmpi ne, %22, %c0_i32_10 : i32
      scf.if %23 {
        %c0_11 = arith.constant 0 : index
        %c0_12 = arith.constant 0 : index
        %24 = vector.load %arg12[%c0_11, %c0_12] : memref<128x32xf32, #tpu.memory_space<vmem>>, vector<128x32xf32>
        %c0_13 = arith.constant 0 : index
        %c0_14 = arith.constant 0 : index
        %25 = vector.load %arg5[%c0_13, %c0_14] : memref<128x32xbf16, #tpu.memory_space<vmem>>, vector<128x32xbf16>
        %26 = arith.extf %25 : vector<128x32xbf16> to vector<128x32xf32>
        %cst_15 = arith.constant 1.010000e+00 : f32
        %27 = vector.broadcast %cst_15 : f32 to vector<128x32xf32>
        %28 = arith.mulf %27, %26 : vector<128x32xf32>
        %29 = arith.addf %24, %28 : vector<128x32xf32>
        %c0_16 = arith.constant 0 : index
        %c0_17 = arith.constant 0 : index
        %30 = vector.load %arg12[%c0_16, %c0_17] : memref<128x32xf32, #tpu.memory_space<vmem>>, vector<128x32xf32>
        tpu.vector_store %arg12[%c0_16, %c0_17], %29 {strides = array<i32>} : memref<128x32xf32, #tpu.memory_space<vmem>>, vector<128x32xf32>,
      } else {
      }
    } else {
    }
    %c1_i32 = arith.constant 1 : i32
    %11 = arith.subi %1, %c1_i32 : i32
    %12 = arith.cmpi eq, %arg1, %11 : i32
    %13 = arith.extui %12 : i1 to i32
    %c0_i32_2 = arith.constant 0 : i32
    %14 = arith.cmpi ne, %13, %c0_i32_2 : i32
    scf.if %14 {
      %c0 = arith.constant 0 : index
      %c0_3 = arith.constant 0 : index
      %15 = vector.load %arg12[%c0, %c0_3] : memref<128x32xf32, #tpu.memory_space<vmem>>, vector<128x32xf32>
      %16 = arith.truncf %15 : vector<128x32xf32> to vector<128x32xbf16>
      %c0_4 = arith.constant 0 : index
      %c0_5 = arith.constant 0 : index
      %17 = vector.load %arg7[%c0_4, %c0_5] : memref<32x32xbf16, #tpu.memory_space<vmem>>, vector<32x32xbf16>
      %cst = arith.constant dense<0.000000e+00> : vector<128x32xf32>
      %18 = tpu.matmul %16, %17, %cst {dimension_numbers = #tpu.dot_dimension_numbers<[1], [0], [0], [1], [0, 0, 1, 1], [], []>} : vector<128x32xbf16>, vector<32x32xbf16>, vector<128x32xf32> -> vector<128x32xf32>
      %c0_6 = arith.constant 0 : index
      %c0_7 = arith.constant 0 : index
      %19 = vector.load %arg8[%c0_6, %c0_7] : memref<1x32xf32, #tpu.memory_space<vmem>>, vector<1x32xf32>
      %20 = vector.broadcast %19 : vector<1x32xf32> to vector<128x32xf32>
      %21 = arith.addf %18, %20 : vector<128x32xf32>
      %cst_8 = arith.constant 0.000000e+00 : f32
      %22 = vector.broadcast %cst_8 : f32 to vector<128x32xf32>
      %23 = arith.maximumf %21, %22 : vector<128x32xf32>
      %24 = arith.truncf %23 : vector<128x32xf32> to vector<128x32xbf16>
      %c0_9 = arith.constant 0 : index
      %c0_10 = arith.constant 0 : index
      %25 = vector.load %arg9[%c0_9, %c0_10] : memref<32x32xbf16, #tpu.memory_space<vmem>>, vector<32x32xbf16>
      %cst_11 = arith.constant dense<0.000000e+00> : vector<128x32xf32>
      %26 = tpu.matmul %24, %25, %cst_11 {dimension_numbers = #tpu.dot_dimension_numbers<[1], [0], [0], [1], [0, 0, 1, 1], [], []>} : vector<128x32xbf16>, vector<32x32xbf16>, vector<128x32xf32> -> vector<128x32xf32>
      %c0_12 = arith.constant 0 : index
      %c0_13 = arith.constant 0 : index
      %27 = vector.load %arg10[%c0_12, %c0_13] : memref<1x32xf32, #tpu.memory_space<vmem>>, vector<1x32xf32>
      %28 = vector.broadcast %27 : vector<1x32xf32> to vector<128x32xf32>
      %29 = arith.addf %26, %28 : vector<128x32xf32>
      %cst_14 = arith.constant 0.000000e+00 : f32
      %30 = vector.broadcast %cst_14 : f32 to vector<128x32xf32>
      %31 = arith.maximumf %29, %30 : vector<128x32xf32>
      %c0_15 = arith.constant 0 : index
      %c0_16 = arith.constant 0 : index
      %32 = vector.load %arg6[%c0_15, %c0_16] : memref<1x128xi32, #tpu.memory_space<vmem>>, vector<1x128xi32>
      %33 = tpu.iota {dimensions = array<i32: 0>} : vector<2x128xi32>
      %34 = vector.broadcast %32 : vector<1x128xi32> to vector<2x128xi32>
      %35 = arith.cmpi eq, %34, %33 : vector<2x128xi32>
      %36 = arith.extui %35 : vector<2x128xi1> to vector<2x128xi32>
      %37 = arith.sitofp %36 : vector<2x128xi32> to vector<2x128xf32>
      %38 = arith.truncf %37 : vector<2x128xf32> to vector<2x128xbf16>
      %39 = arith.truncf %31 : vector<128x32xf32> to vector<128x32xbf16>
      %cst_17 = arith.constant dense<0.000000e+00> : vector<2x32xf32>
      %40 = tpu.matmul %38, %39, %cst_17 {dimension_numbers = #tpu.dot_dimension_numbers<[1], [0], [0], [1], [0, 0, 1, 1], [], []>} : vector<2x128xbf16>, vector<128x32xbf16>, vector<2x32xf32> -> vector<2x32xf32>
      %41 = vector.shape_cast %40 : vector<2x32xf32> to vector<1x2x32xf32>
      %c0_18 = arith.constant 0 : index
      %c0_19 = arith.constant 0 : index
      %c0_20 = arith.constant 0 : index
      %42 = vector.load %arg11[%c0_18, %c0_19, %c0_20] : memref<1x2x32xf32, #tpu.memory_space<vmem>>, vector<1x2x32xf32>
      tpu.vector_store %arg11[%c0_18, %c0_19, %c0_20], %41 {strides = array<i32>} : memref<1x2x32xf32, #tpu.memory_space<vmem>>, vector<1x2x32xf32>,
    } else {
    }
    return
  }
  func.func @transform_0(%arg0: i32, %arg1: i32, %arg2: memref<1xi32, #tpu.memory_space<smem>>, %arg3: memref<1xi32, #tpu.memory_space<smem>>) -> (i32, i32) {
    %0 = arith.index_cast %arg0 : i32 to index
    %1 = memref.load %arg2[%0] : memref<1xi32, #tpu.memory_space<smem>>
    %2 = arith.index_cast %arg0 : i32 to index
    %3 = memref.load %arg3[%2] : memref<1xi32, #tpu.memory_space<smem>>
    %c1_i32 = arith.constant 1 : i32
    %4 = arith.subi %3, %c1_i32 : i32
    %5 = arith.minsi %arg1, %4 : i32
    %6 = arith.addi %1, %5 : i32
    %c0_i32 = arith.constant 0 : i32
    return %arg0, %6 : i32, i32
  }
  func.func @transform_1(%arg0: i32, %arg1: i32, %arg2: memref<1xi32, #tpu.memory_space<smem>>, %arg3: memref<1xi32, #tpu.memory_space<smem>>) -> (i32, i32) {
    %0 = arith.index_cast %arg0 : i32 to index
    %1 = memref.load %arg2[%0] : memref<1xi32, #tpu.memory_space<smem>>
    %2 = arith.index_cast %arg0 : i32 to index
    %3 = memref.load %arg3[%2] : memref<1xi32, #tpu.memory_space<smem>>
    %c1_i32 = arith.constant 1 : i32
    %4 = arith.subi %3, %c1_i32 : i32
    %5 = arith.minsi %arg1, %4 : i32
    %6 = arith.addi %1, %5 : i32
    %c0_i32 = arith.constant 0 : i32
    %c0_i32_0 = arith.constant 0 : i32
    return %6, %c0_i32 : i32, i32
  }
  func.func @transform_2(%arg0: i32, %arg1: i32, %arg2: memref<1xi32, #tpu.memory_space<smem>>, %arg3: memref<1xi32, #tpu.memory_space<smem>>) -> (i32, i32) {
    %c0_i32 = arith.constant 0 : i32
    %c0_i32_0 = arith.constant 0 : i32
    return %c0_i32, %arg0 : i32, i32
  }
  func.func @transform_3(%arg0: i32, %arg1: i32, %arg2: memref<1xi32, #tpu.memory_space<smem>>, %arg3: memref<1xi32, #tpu.memory_space<smem>>) -> (i32, i32) {
    %c0_i32 = arith.constant 0 : i32
    %c0_i32_0 = arith.constant 0 : i32
    %c0_i32_1 = arith.constant 0 : i32
    return %c0_i32, %c0_i32_0 : i32, i32
  }
  func.func @transform_4(%arg0: i32, %arg1: i32, %arg2: memref<1xi32, #tpu.memory_space<smem>>, %arg3: memref<1xi32, #tpu.memory_space<smem>>) -> (i32, i32) {
    %c0_i32 = arith.constant 0 : i32
    %c0_i32_0 = arith.constant 0 : i32
    %c0_i32_1 = arith.constant 0 : i32
    return %c0_i32, %c0_i32_0 : i32, i32
  }
  func.func @transform_5(%arg0: i32, %arg1: i32, %arg2: memref<1xi32, #tpu.memory_space<smem>>, %arg3: memref<1xi32, #tpu.memory_space<smem>>) -> (i32, i32) {
    %c0_i32 = arith.constant 0 : i32
    %c0_i32_0 = arith.constant 0 : i32
    %c0_i32_1 = arith.constant 0 : i32
    return %c0_i32, %c0_i32_0 : i32, i32
  }
  func.func @transform_6(%arg0: i32, %arg1: i32, %arg2: memref<1xi32, #tpu.memory_space<smem>>, %arg3: memref<1xi32, #tpu.memory_space<smem>>) -> (i32, i32) {
    %c0_i32 = arith.constant 0 : i32
    %c0_i32_0 = arith.constant 0 : i32
    %c0_i32_1 = arith.constant 0 : i32
    return %c0_i32, %c0_i32_0 : i32, i32
  }
  func.func @transform_7(%arg0: i32, %arg1: i32, %arg2: memref<1xi32, #tpu.memory_space<smem>>, %arg3: memref<1xi32, #tpu.memory_space<smem>>) -> (i32, i32, i32) {
    %c0_i32 = arith.constant 0 : i32
    %c0_i32_0 = arith.constant 0 : i32
    %c0_i32_1 = arith.constant 0 : i32
    return %arg0, %c0_i32, %c0_i32_0 : i32, i32, i32
  }
}

module attributes {stable_mosaic.version = 11 : i64} {
  func.func @_post_pool_kernel(%arg0: i32, %arg1: memref<1x2x32xf32, #tpu.memory_space<vmem>>, %arg2: memref<2x1xf32, #tpu.memory_space<vmem>>, %arg3: memref<32x32xbf16, #tpu.memory_space<vmem>>, %arg4: memref<1x32xf32, #tpu.memory_space<vmem>>, %arg5: memref<32x32xbf16, #tpu.memory_space<vmem>>, %arg6: memref<1x32xf32, #tpu.memory_space<vmem>>, %arg7: memref<32x32xbf16, #tpu.memory_space<vmem>>, %arg8: memref<1x32xf32, #tpu.memory_space<vmem>>, %arg9: memref<32x32xbf16, #tpu.memory_space<vmem>>, %arg10: memref<1x32xf32, #tpu.memory_space<vmem>>, %arg11: memref<32x1xbf16, #tpu.memory_space<vmem>>, %arg12: memref<1x1xf32, #tpu.memory_space<vmem>>, %arg13: memref<2x1xf32, #tpu.memory_space<vmem>>) attributes {dimension_semantics = [#tpu.dimension_semantics<parallel>], iteration_bounds = array<i64: 1>, scalar_prefetch = 0 : i64, scratch_operands = 0 : i64, tpu.core_type = #tpu.core_type<tc>, window_params = [{transform_indices = @transform_0, window_bounds = array<i64: 1, 2, 32>}, {transform_indices = @transform_1, window_bounds = array<i64: 2, 1>}, {pipeline_mode = #tpu.pipeline_mode<synchronous>, transform_indices = @transform_2, window_bounds = array<i64: 32, 32>}, {pipeline_mode = #tpu.pipeline_mode<synchronous>, transform_indices = @transform_3, window_bounds = array<i64: 1, 32>}, {pipeline_mode = #tpu.pipeline_mode<synchronous>, transform_indices = @transform_4, window_bounds = array<i64: 32, 32>}, {pipeline_mode = #tpu.pipeline_mode<synchronous>, transform_indices = @transform_5, window_bounds = array<i64: 1, 32>}, {pipeline_mode = #tpu.pipeline_mode<synchronous>, transform_indices = @transform_6, window_bounds = array<i64: 32, 32>}, {pipeline_mode = #tpu.pipeline_mode<synchronous>, transform_indices = @transform_7, window_bounds = array<i64: 1, 32>}, {pipeline_mode = #tpu.pipeline_mode<synchronous>, transform_indices = @transform_8, window_bounds = array<i64: 32, 32>}, {pipeline_mode = #tpu.pipeline_mode<synchronous>, transform_indices = @transform_9, window_bounds = array<i64: 1, 32>}, {pipeline_mode = #tpu.pipeline_mode<synchronous>, transform_indices = @transform_10, window_bounds = array<i64: 32, 1>}, {pipeline_mode = #tpu.pipeline_mode<synchronous>, transform_indices = @transform_11, window_bounds = array<i64: 1, 1>}, {transform_indices = @transform_12, window_bounds = array<i64: 2, 1>}]} {
    %c0 = arith.constant 0 : index
    %c0_0 = arith.constant 0 : index
    %c0_1 = arith.constant 0 : index
    %0 = vector.load %arg1[%c0, %c0_0, %c0_1] : memref<1x2x32xf32, #tpu.memory_space<vmem>>, vector<1x2x32xf32>
    %cst = arith.constant dense<0.000000e+00> : vector<2x32xf32>
    %1 = vector.multi_reduction <add>, %0, %cst [0] : vector<1x2x32xf32> to vector<2x32xf32>
    %c0_2 = arith.constant 0 : index
    %c0_3 = arith.constant 0 : index
    %2 = vector.load %arg2[%c0_2, %c0_3] : memref<2x1xf32, #tpu.memory_space<vmem>>, vector<2x1xf32>
    %3 = vector.broadcast %2 : vector<2x1xf32> to vector<2x32xf32>
    %4 = arith.mulf %1, %3 : vector<2x32xf32>
    %5 = arith.truncf %4 : vector<2x32xf32> to vector<2x32xbf16>
    %c0_4 = arith.constant 0 : index
    %c0_5 = arith.constant 0 : index
    %6 = vector.load %arg3[%c0_4, %c0_5] : memref<32x32xbf16, #tpu.memory_space<vmem>>, vector<32x32xbf16>
    %cst_6 = arith.constant dense<0.000000e+00> : vector<2x32xf32>
    %7 = tpu.matmul %5, %6, %cst_6 {dimension_numbers = #tpu.dot_dimension_numbers<[1], [0], [0], [1], [0, 0, 1, 1], [], []>} : vector<2x32xbf16>, vector<32x32xbf16>, vector<2x32xf32> -> vector<2x32xf32>
    %c0_7 = arith.constant 0 : index
    %c0_8 = arith.constant 0 : index
    %8 = vector.load %arg4[%c0_7, %c0_8] : memref<1x32xf32, #tpu.memory_space<vmem>>, vector<1x32xf32>
    %9 = vector.broadcast %8 : vector<1x32xf32> to vector<2x32xf32>
    %10 = arith.addf %7, %9 : vector<2x32xf32>
    %cst_9 = arith.constant 0.000000e+00 : f32
    %11 = vector.broadcast %cst_9 : f32 to vector<2x32xf32>
    %12 = arith.maximumf %10, %11 : vector<2x32xf32>
    %13 = arith.truncf %12 : vector<2x32xf32> to vector<2x32xbf16>
    %c0_10 = arith.constant 0 : index
    %c0_11 = arith.constant 0 : index
    %14 = vector.load %arg5[%c0_10, %c0_11] : memref<32x32xbf16, #tpu.memory_space<vmem>>, vector<32x32xbf16>
    %cst_12 = arith.constant dense<0.000000e+00> : vector<2x32xf32>
    %15 = tpu.matmul %13, %14, %cst_12 {dimension_numbers = #tpu.dot_dimension_numbers<[1], [0], [0], [1], [0, 0, 1, 1], [], []>} : vector<2x32xbf16>, vector<32x32xbf16>, vector<2x32xf32> -> vector<2x32xf32>
    %c0_13 = arith.constant 0 : index
    %c0_14 = arith.constant 0 : index
    %16 = vector.load %arg6[%c0_13, %c0_14] : memref<1x32xf32, #tpu.memory_space<vmem>>, vector<1x32xf32>
    %17 = vector.broadcast %16 : vector<1x32xf32> to vector<2x32xf32>
    %18 = arith.addf %15, %17 : vector<2x32xf32>
    %cst_15 = arith.constant 0.000000e+00 : f32
    %19 = vector.broadcast %cst_15 : f32 to vector<2x32xf32>
    %20 = arith.maximumf %18, %19 : vector<2x32xf32>
    %21 = arith.truncf %20 : vector<2x32xf32> to vector<2x32xbf16>
    %c0_16 = arith.constant 0 : index
    %c0_17 = arith.constant 0 : index
    %22 = vector.load %arg7[%c0_16, %c0_17] : memref<32x32xbf16, #tpu.memory_space<vmem>>, vector<32x32xbf16>
    %cst_18 = arith.constant dense<0.000000e+00> : vector<2x32xf32>
    %23 = tpu.matmul %21, %22, %cst_18 {dimension_numbers = #tpu.dot_dimension_numbers<[1], [0], [0], [1], [0, 0, 1, 1], [], []>} : vector<2x32xbf16>, vector<32x32xbf16>, vector<2x32xf32> -> vector<2x32xf32>
    %c0_19 = arith.constant 0 : index
    %c0_20 = arith.constant 0 : index
    %24 = vector.load %arg8[%c0_19, %c0_20] : memref<1x32xf32, #tpu.memory_space<vmem>>, vector<1x32xf32>
    %25 = vector.broadcast %24 : vector<1x32xf32> to vector<2x32xf32>
    %26 = arith.addf %23, %25 : vector<2x32xf32>
    %cst_21 = arith.constant 0.000000e+00 : f32
    %27 = vector.broadcast %cst_21 : f32 to vector<2x32xf32>
    %28 = arith.maximumf %26, %27 : vector<2x32xf32>
    %29 = arith.truncf %28 : vector<2x32xf32> to vector<2x32xbf16>
    %c0_22 = arith.constant 0 : index
    %c0_23 = arith.constant 0 : index
    %30 = vector.load %arg9[%c0_22, %c0_23] : memref<32x32xbf16, #tpu.memory_space<vmem>>, vector<32x32xbf16>
    %cst_24 = arith.constant dense<0.000000e+00> : vector<2x32xf32>
    %31 = tpu.matmul %29, %30, %cst_24 {dimension_numbers = #tpu.dot_dimension_numbers<[1], [0], [0], [1], [0, 0, 1, 1], [], []>} : vector<2x32xbf16>, vector<32x32xbf16>, vector<2x32xf32> -> vector<2x32xf32>
    %c0_25 = arith.constant 0 : index
    %c0_26 = arith.constant 0 : index
    %32 = vector.load %arg10[%c0_25, %c0_26] : memref<1x32xf32, #tpu.memory_space<vmem>>, vector<1x32xf32>
    %33 = vector.broadcast %32 : vector<1x32xf32> to vector<2x32xf32>
    %34 = arith.addf %31, %33 : vector<2x32xf32>
    %cst_27 = arith.constant 0.000000e+00 : f32
    %35 = vector.broadcast %cst_27 : f32 to vector<2x32xf32>
    %36 = arith.maximumf %34, %35 : vector<2x32xf32>
    %37 = arith.truncf %36 : vector<2x32xf32> to vector<2x32xbf16>
    %c0_28 = arith.constant 0 : index
    %c0_29 = arith.constant 0 : index
    %38 = vector.load %arg11[%c0_28, %c0_29] : memref<32x1xbf16, #tpu.memory_space<vmem>>, vector<32x1xbf16>
    %cst_30 = arith.constant dense<0.000000e+00> : vector<2x1xf32>
    %39 = tpu.matmul %37, %38, %cst_30 {dimension_numbers = #tpu.dot_dimension_numbers<[1], [0], [0], [1], [0, 0, 1, 1], [], []>} : vector<2x32xbf16>, vector<32x1xbf16>, vector<2x1xf32> -> vector<2x1xf32>
    %c0_31 = arith.constant 0 : index
    %c0_32 = arith.constant 0 : index
    %40 = vector.load %arg12[%c0_31, %c0_32] : memref<1x1xf32, #tpu.memory_space<vmem>>, vector<1x1xf32>
    %41 = vector.broadcast %40 : vector<1x1xf32> to vector<2x1xf32>
    %42 = arith.addf %39, %41 : vector<2x1xf32>
    %c0_33 = arith.constant 0 : index
    %c0_34 = arith.constant 0 : index
    %43 = vector.load %arg13[%c0_33, %c0_34] : memref<2x1xf32, #tpu.memory_space<vmem>>, vector<2x1xf32>
    tpu.vector_store %arg13[%c0_33, %c0_34], %42 {strides = array<i32>} : memref<2x1xf32, #tpu.memory_space<vmem>>, vector<2x1xf32>,
    return
  }
  func.func @transform_0(%arg0: i32) -> (i32, i32, i32) {
    %c0_i32 = arith.constant 0 : i32
    %c0_i32_0 = arith.constant 0 : i32
    %c0_i32_1 = arith.constant 0 : i32
    return %c0_i32, %arg0, %c0_i32_0 : i32, i32, i32
  }
  func.func @transform_1(%arg0: i32) -> (i32, i32) {
    %c0_i32 = arith.constant 0 : i32
    %c0_i32_0 = arith.constant 0 : i32
    return %arg0, %c0_i32 : i32, i32
  }
  func.func @transform_2(%arg0: i32) -> (i32, i32) {
    %c0_i32 = arith.constant 0 : i32
    %c0_i32_0 = arith.constant 0 : i32
    %c0_i32_1 = arith.constant 0 : i32
    return %c0_i32, %c0_i32_0 : i32, i32
  }
  func.func @transform_3(%arg0: i32) -> (i32, i32) {
    %c0_i32 = arith.constant 0 : i32
    %c0_i32_0 = arith.constant 0 : i32
    %c0_i32_1 = arith.constant 0 : i32
    return %c0_i32, %c0_i32_0 : i32, i32
  }
  func.func @transform_4(%arg0: i32) -> (i32, i32) {
    %c0_i32 = arith.constant 0 : i32
    %c0_i32_0 = arith.constant 0 : i32
    %c0_i32_1 = arith.constant 0 : i32
    return %c0_i32, %c0_i32_0 : i32, i32
  }
  func.func @transform_5(%arg0: i32) -> (i32, i32) {
    %c0_i32 = arith.constant 0 : i32
    %c0_i32_0 = arith.constant 0 : i32
    %c0_i32_1 = arith.constant 0 : i32
    return %c0_i32, %c0_i32_0 : i32, i32
  }
  func.func @transform_6(%arg0: i32) -> (i32, i32) {
    %c0_i32 = arith.constant 0 : i32
    %c0_i32_0 = arith.constant 0 : i32
    %c0_i32_1 = arith.constant 0 : i32
    return %c0_i32, %c0_i32_0 : i32, i32
  }
  func.func @transform_7(%arg0: i32) -> (i32, i32) {
    %c0_i32 = arith.constant 0 : i32
    %c0_i32_0 = arith.constant 0 : i32
    %c0_i32_1 = arith.constant 0 : i32
    return %c0_i32, %c0_i32_0 : i32, i32
  }
  func.func @transform_8(%arg0: i32) -> (i32, i32) {
    %c0_i32 = arith.constant 0 : i32
    %c0_i32_0 = arith.constant 0 : i32
    %c0_i32_1 = arith.constant 0 : i32
    return %c0_i32, %c0_i32_0 : i32, i32
  }
  func.func @transform_9(%arg0: i32) -> (i32, i32) {
    %c0_i32 = arith.constant 0 : i32
    %c0_i32_0 = arith.constant 0 : i32
    %c0_i32_1 = arith.constant 0 : i32
    return %c0_i32, %c0_i32_0 : i32, i32
  }
  func.func @transform_10(%arg0: i32) -> (i32, i32) {
    %c0_i32 = arith.constant 0 : i32
    %c0_i32_0 = arith.constant 0 : i32
    %c0_i32_1 = arith.constant 0 : i32
    return %c0_i32, %c0_i32_0 : i32, i32
  }
  func.func @transform_11(%arg0: i32) -> (i32, i32) {
    %c0_i32 = arith.constant 0 : i32
    %c0_i32_0 = arith.constant 0 : i32
    %c0_i32_1 = arith.constant 0 : i32
    return %c0_i32, %c0_i32_0 : i32, i32
  }
  func.func @transform_12(%arg0: i32) -> (i32, i32) {
    %c0_i32 = arith.constant 0 : i32
    %c0_i32_0 = arith.constant 0 : i32
    return %arg0, %c0_i32 : i32, i32
  }
}

</mosaic_0001>

<llo_original>
// kernel: gin_test_forward.3
$region0: #{gin_test_forward.3}
  #allocation0 [shape = 'u32[]', space=smem, size = 0x4, offset = 0x4, fixed_abs, tag = 'smem constant byte address 0x4 - core index']
  #allocation1 [shape = 'u32[144,128]{1,0:T(1,128)}', space=vmem, size = 0x12000, scoped, tag = 'internal scratch']
  #allocation2 [shape = 'f32[1,1]{1,0:T(1,128)S(1)}', space=vmem, size = 0x200, scoped, tag = 'scoped memory for gin_test_forward.3']
  %s0 = inlined_call_operand.vmem [shape: f32[1,2,32], index: 0, kind: input, shape index: {}]
  %s1 = inlined_call_operand.vmem [shape: f32[2,1], index: 1, kind: input, shape index: {}]
  %s2 = inlined_call_operand.vmem [shape: bf16[32,32], index: 2, kind: input, shape index: {}]
  %s3 = inlined_call_operand.vmem [shape: f32[1,32], index: 3, kind: input, shape index: {}]
  %s4 = inlined_call_operand.vmem [shape: bf16[32,32], index: 4, kind: input, shape index: {}]
  %s5 = inlined_call_operand.vmem [shape: f32[1,32], index: 5, kind: input, shape index: {}]
  %s6 = inlined_call_operand.vmem [shape: bf16[32,32], index: 6, kind: input, shape index: {}]
  %s7 = inlined_call_operand.vmem [shape: f32[1,32], index: 7, kind: input, shape index: {}]
  %s8 = inlined_call_operand.vmem [shape: bf16[32,32], index: 8, kind: input, shape index: {}]
  %s9 = inlined_call_operand.vmem [shape: f32[1,32], index: 9, kind: input, shape index: {}]
  %s10 = inlined_call_operand.vmem [shape: bf16[32,1], index: 10, kind: input, shape index: {}]
  %s11 = inlined_call_operand.<no memory space> [shape: f32[1,1], index: 11, kind: input, shape index: {}]
  %s12 = inlined_call_operand.vmem [shape: f32[2,1], index: 12, kind: output, shape index: {}]
  %s13 = sld [smem:[#allocation0]]
  $region58: #{gin_test_forward.3} parent=0
    _
  %s15 = ssub.s32 1, %s13
  %s16 = scalar_select 0, %s15, %s13
  %v17 = vstv %s11
  %18 = vst [vmem:[#allocation2] sm:$0x1] %v17
  // Predicated region
  $region2: #{gin_test_forward.3} parent=0 // pred_check
    _
  $region3: #{gin_test_forward.3} parent=0 // pred_check_branch
    %20 = sbr.rel (0) target = $region5
  $region4: #{gin_test_forward.3} parent=0 // pred_region
    _
  $region5: #{gin_test_forward.3} parent=0 // pred_fallthru
    _
  // Predicated region
  $region6: #{gin_test_forward.3} parent=0 // pred_check
    _
  $region7: #{gin_test_forward.3} parent=0 // pred_check_branch
    %22 = sbr.rel (0) target = $region9
  $region8: #{gin_test_forward.3} parent=0 // pred_region
    _
  $region9: #{gin_test_forward.3} parent=0 // pred_fallthru
    _
  // Predicated region
  $region10: #{gin_test_forward.3} parent=0 // pred_check
    _
  $region11: #{gin_test_forward.3} parent=0 // pred_check_branch
    %24 = sbr.rel (0) target = $region13
  $region12: #{gin_test_forward.3} parent=0 // pred_region
    _
  $region13: #{gin_test_forward.3} parent=0 // pred_fallthru
    _
  // Predicated region
  $region14: #{gin_test_forward.3} parent=0 // pred_check
    _
  $region15: #{gin_test_forward.3} parent=0 // pred_check_branch
    %26 = sbr.rel (0) target = $region17
  $region16: #{gin_test_forward.3} parent=0 // pred_region
    _
  $region17: #{gin_test_forward.3} parent=0 // pred_fallthru
    _
  // Predicated region
  $region18: #{gin_test_forward.3} parent=0 // pred_check
    _
  $region19: #{gin_test_forward.3} parent=0 // pred_check_branch
    %28 = sbr.rel (0) target = $region21
  $region20: #{gin_test_forward.3} parent=0 // pred_region
    _
  $region21: #{gin_test_forward.3} parent=0 // pred_fallthru
    _
  // Predicated region
  $region22: #{gin_test_forward.3} parent=0 // pred_check
    _
  $region23: #{gin_test_forward.3} parent=0 // pred_check_branch
    %30 = sbr.rel (0) target = $region25
  $region24: #{gin_test_forward.3} parent=0 // pred_region
    _
  $region25: #{gin_test_forward.3} parent=0 // pred_fallthru
    _
  // Predicated region
  $region26: #{gin_test_forward.3} parent=0 // pred_check
    _
  $region27: #{gin_test_forward.3} parent=0 // pred_check_branch
    %32 = sbr.rel (0) target = $region29
  $region28: #{gin_test_forward.3} parent=0 // pred_region
    _
  $region29: #{gin_test_forward.3} parent=0 // pred_fallthru
    _
  // Predicated region
  $region30: #{gin_test_forward.3} parent=0 // pred_check
    _
  $region31: #{gin_test_forward.3} parent=0 // pred_check_branch
    %34 = sbr.rel (0) target = $region33
  $region32: #{gin_test_forward.3} parent=0 // pred_region
    _
  $region33: #{gin_test_forward.3} parent=0 // pred_fallthru
    _
  // Predicated region
  $region34: #{gin_test_forward.3} parent=0 // pred_check
    _
  $region35: #{gin_test_forward.3} parent=0 // pred_check_branch
    %36 = sbr.rel (0) target = $region37
  $region36: #{gin_test_forward.3} parent=0 // pred_region
    _
  $region37: #{gin_test_forward.3} parent=0 // pred_fallthru
    _
  // Predicated region
  $region38: #{gin_test_forward.3} parent=0 // pred_check
    _
  $region39: #{gin_test_forward.3} parent=0 // pred_check_branch
    %38 = sbr.rel (0) target = $region41
  $region40: #{gin_test_forward.3} parent=0 // pred_region
    _
  $region41: #{gin_test_forward.3} parent=0 // pred_fallthru
    _
  // Predicated region
  $region42: #{gin_test_forward.3} parent=0 // pred_check
    _
  $region43: #{gin_test_forward.3} parent=0 // pred_check_branch
    %40 = sbr.rel (0) target = $region45
  $region44: #{gin_test_forward.3} parent=0 // pred_region
    _
  $region45: #{gin_test_forward.3} parent=0 // pred_fallthru
    _
  // Predicated region
  $region46: #{gin_test_forward.3} parent=0 // pred_check
    _
  $region47: #{gin_test_forward.3} parent=0 // pred_check_branch
    %42 = sbr.rel (0) target = $region49
  $region48: #{gin_test_forward.3} parent=0 // pred_region
    _
  $region49: #{gin_test_forward.3} parent=0 // pred_fallthru
    _
  %v44 = vld [vmem:[%s0] sm:$0x3]
  %v45 = vadd.f32 %v44, 0.0
  %v46 = vld [vmem:[%s1] sm:$0x3]
  %48 = vset.pattern.permute.xlu0 0
  %49 = vperm.xlu0 %48, %v46
  %v50 = vpop.permute.xlu0 %49
  %v52 = vmul.f32 %v45, %v50
  %v53 = vpack.c.bf16 %v52, %v52
  %v54 = vld [vmem:[%s2] sm:$0xf]
  %v55 = vld [vmem:[%s2 + $0x4] sm:$0xf]
  %v56 = vld [vmem:[%s2 + $0x8] sm:$0xf]
  %v57 = vld [vmem:[%s2 + $0xc] sm:$0xf]
  %v58 = vld [vmem:[%s3] sm:$0x1]
  %v60 = vlaneseq
  %v61 = vshrl.u32 %v60, 7
  %v62 = vsub.s32 0, %v61
  %v63 = vrot.slane %v58, %v62
  %v69 = vunpack.c.l.b16 %v54
  %v70 = vunpack.c.l.b16 %v55
  %v71 = vunpack.c.l.b16 %v56
  %v72 = vunpack.c.l.b16 %v57
  %v73 = vpack.c.b16 %v70, %v69
  %v74 = vpack.c.b16 %v72, %v71
  %vm77 = vcmask 261120
  %v79 = vsel %vm77, %v53, 0
  %81 = vmatprep.subr.bf16.mxu0 0
  %82 = vmatpush1.bf16.msra.mxu0 %v73
  %83 = vmatprep.subr.bf16.mxu0 0
  %84 = vmatpush1.bf16.msra.mxu0 %v74
  %85 = vmatprep.subr.bf16.mxu0 0
  %86 = vmatpush1.bf16.msra.mxu0 0
  %87 = vmatprep.subr.bf16.mxu0 0
  %88 = vmatpush1.bf16.msra.mxu0 0
  %89 = vmatprep.subr.bf16.mxu0 0
  %90 = vmatpush1.bf16.msra.mxu0 0
  %91 = vmatprep.subr.bf16.mxu0 0
  %92 = vmatpush1.bf16.msra.mxu0 0
  %93 = vmatprep.subr.bf16.mxu0 0
  %94 = vmatpush1.bf16.msra.mxu0 0
  %95 = vmatprep.subr.bf16.mxu0 0
  %96 = vmatpush1.bf16.msra.mxu0 0
  %97 = vmatprep.subr.bf16.mxu0 0
  %98 = vmatpush1.bf16.msra.mxu0 0
  %99 = vmatprep.subr.bf16.mxu0 0
  %100 = vmatpush1.bf16.msra.mxu0 0
  %101 = vmatprep.subr.bf16.mxu0 0
  %102 = vmatpush1.bf16.msra.mxu0 0
  %103 = vmatprep.subr.bf16.mxu0 0
  %104 = vmatpush1.bf16.msra.mxu0 0
  %105 = vmatprep.subr.bf16.mxu0 0
  %106 = vmatpush1.bf16.msra.mxu0 0
  %107 = vmatprep.subr.bf16.mxu0 0
  %108 = vmatpush1.bf16.msra.mxu0 0
  %109 = vmatprep.subr.bf16.mxu0 0
  %110 = vmatpush1.bf16.msra.mxu0 0
  %111 = vmatprep.subr.bf16.mxu0 0
  %112 = vmatpush1.bf16.msra.mxu0 0
  %113 = vmatprep.mubr.bf16.mxu0 0
  %114 = vmatmul.mubr.bf16.gmra.mrb[0].mxu0 %v79
  %v115 = vpop.f32.mrb[0].mxu0
  %v116 = vadd.f32 %v63, %v115
  %v117 = vpop.f32.mrb[0].mxu0
  %v118 = vpop.f32.mrb[0].mxu0
  %v119 = vpop.f32.mrb[0].mxu0
  %120 = vdwg.mxu0
  %v121 = vmax.f32 %v116, 0.0
  %v122 = vpack.c.bf16 %v121, %v121
  %v123 = vld [vmem:[%s4] sm:$0xf]
  %v124 = vld [vmem:[%s4 + $0x4] sm:$0xf]
  %v125 = vld [vmem:[%s4 + $0x8] sm:$0xf]
  %v126 = vld [vmem:[%s4 + $0xc] sm:$0xf]
  %v127 = vld [vmem:[%s5] sm:$0x1]
  %v129 = vlaneseq
  %v130 = vshrl.u32 %v129, 7
  %v131 = vsub.s32 0, %v130
  %v132 = vrot.slane %v127, %v131
  %v138 = vunpack.c.l.b16 %v123
  %v139 = vunpack.c.l.b16 %v124
  %v140 = vunpack.c.l.b16 %v125
  %v141 = vunpack.c.l.b16 %v126
  %v142 = vpack.c.b16 %v139, %v138
  %v143 = vpack.c.b16 %v141, %v140
  %v147 = vsel %vm77, %v122, 0
  %149 = vmatprep.subr.bf16.mxu0 0
  %150 = vmatpush1.bf16.msra.mxu0 %v142
  %151 = vmatprep.subr.bf16.mxu0 0
  %152 = vmatpush1.bf16.msra.mxu0 %v143
  %153 = vmatprep.subr.bf16.mxu0 0
  %154 = vmatpush1.bf16.msra.mxu0 0
  %155 = vmatprep.subr.bf16.mxu0 0
  %156 = vmatpush1.bf16.msra.mxu0 0
  %157 = vmatprep.subr.bf16.mxu0 0
  %158 = vmatpush1.bf16.msra.mxu0 0
  %159 = vmatprep.subr.bf16.mxu0 0
  %160 = vmatpush1.bf16.msra.mxu0 0
  %161 = vmatprep.subr.bf16.mxu0 0
  %162 = vmatpush1.bf16.msra.mxu0 0
  %163 = vmatprep.subr.bf16.mxu0 0
  %164 = vmatpush1.bf16.msra.mxu0 0
  %165 = vmatprep.subr.bf16.mxu0 0
  %166 = vmatpush1.bf16.msra.mxu0 0
  %167 = vmatprep.subr.bf16.mxu0 0
  %168 = vmatpush1.bf16.msra.mxu0 0
  %169 = vmatprep.subr.bf16.mxu0 0
  %170 = vmatpush1.bf16.msra.mxu0 0
  %171 = vmatprep.subr.bf16.mxu0 0
  %172 = vmatpush1.bf16.msra.mxu0 0
  %173 = vmatprep.subr.bf16.mxu0 0
  %174 = vmatpush1.bf16.msra.mxu0 0
  %175 = vmatprep.subr.bf16.mxu0 0
  %176 = vmatpush1.bf16.msra.mxu0 0
  %177 = vmatprep.subr.bf16.mxu0 0
  %178 = vmatpush1.bf16.msra.mxu0 0
  %179 = vmatprep.subr.bf16.mxu0 0
  %180 = vmatpush1.bf16.msra.mxu0 0
  %181 = vmatprep.mubr.bf16.mxu0 0
  %182 = vmatmul.mubr.bf16.gmra.mrb[0].mxu0 %v147
  %v183 = vpop.f32.mrb[0].mxu0
  %v184 = vadd.f32 %v132, %v183
  %v185 = vpop.f32.mrb[0].mxu0
  %v186 = vpop.f32.mrb[0].mxu0
  %v187 = vpop.f32.mrb[0].mxu0
  %188 = vdwg.mxu0
  %v189 = vmax.f32 %v184, 0.0
  %v190 = vpack.c.bf16 %v189, %v189
  %v191 = vld [vmem:[%s6] sm:$0xf]
  %v192 = vld [vmem:[%s6 + $0x4] sm:$0xf]
  %v193 = vld [vmem:[%s6 + $0x8] sm:$0xf]
  %v194 = vld [vmem:[%s6 + $0xc] sm:$0xf]
  %v195 = vld [vmem:[%s7] sm:$0x1]
  %v197 = vlaneseq
  %v198 = vshrl.u32 %v197, 7
  %v199 = vsub.s32 0, %v198
  %v200 = vrot.slane %v195, %v199
  %v206 = vunpack.c.l.b16 %v191
  %v207 = vunpack.c.l.b16 %v192
  %v208 = vunpack.c.l.b16 %v193
  %v209 = vunpack.c.l.b16 %v194
  %v210 = vpack.c.b16 %v207, %v206
  %v211 = vpack.c.b16 %v209, %v208
  %v215 = vsel %vm77, %v190, 0
  %217 = vmatprep.subr.bf16.mxu0 0
  %218 = vmatpush1.bf16.msra.mxu0 %v210
  %219 = vmatprep.subr.bf16.mxu0 0
  %220 = vmatpush1.bf16.msra.mxu0 %v211
  %221 = vmatprep.subr.bf16.mxu0 0
  %222 = vmatpush1.bf16.msra.mxu0 0
  %223 = vmatprep.subr.bf16.mxu0 0
  %224 = vmatpush1.bf16.msra.mxu0 0
  %225 = vmatprep.subr.bf16.mxu0 0
  %226 = vmatpush1.bf16.msra.mxu0 0
  %227 = vmatprep.subr.bf16.mxu0 0
  %228 = vmatpush1.bf16.msra.mxu0 0
  %229 = vmatprep.subr.bf16.mxu0 0
  %230 = vmatpush1.bf16.msra.mxu0 0
  %231 = vmatprep.subr.bf16.mxu0 0
  %232 = vmatpush1.bf16.msra.mxu0 0
  %233 = vmatprep.subr.bf16.mxu0 0
  %234 = vmatpush1.bf16.msra.mxu0 0
  %235 = vmatprep.subr.bf16.mxu0 0
  %236 = vmatpush1.bf16.msra.mxu0 0
  %237 = vmatprep.subr.bf16.mxu0 0
  %238 = vmatpush1.bf16.msra.mxu0 0
  %239 = vmatprep.subr.bf16.mxu0 0
  %240 = vmatpush1.bf16.msra.mxu0 0
  %241 = vmatprep.subr.bf16.mxu0 0
  %242 = vmatpush1.bf16.msra.mxu0 0
  %243 = vmatprep.subr.bf16.mxu0 0
  %244 = vmatpush1.bf16.msra.mxu0 0
  %245 = vmatprep.subr.bf16.mxu0 0
  %246 = vmatpush1.bf16.msra.mxu0 0
  %247 = vmatprep.subr.bf16.mxu0 0
  %248 = vmatpush1.bf16.msra.mxu0 0
  %249 = vmatprep.mubr.bf16.mxu0 0
  %250 = vmatmul.mubr.bf16.gmra.mrb[0].mxu0 %v215
  %v251 = vpop.f32.mrb[0].mxu0
  %v252 = vadd.f32 %v200, %v251
  %v253 = vpop.f32.mrb[0].mxu0
  %v254 = vpop.f32.mrb[0].mxu0
  %v255 = vpop.f32.mrb[0].mxu0
  %256 = vdwg.mxu0
  %v257 = vmax.f32 %v252, 0.0
  %v258 = vpack.c.bf16 %v257, %v257
  %v259 = vld [vmem:[%s8] sm:$0xf]
  %v260 = vld [vmem:[%s8 + $0x4] sm:$0xf]
  %v261 = vld [vmem:[%s8 + $0x8] sm:$0xf]
  %v262 = vld [vmem:[%s8 + $0xc] sm:$0xf]
  %v263 = vld [vmem:[%s9] sm:$0x1]
  %v265 = vlaneseq
  %v266 = vshrl.u32 %v265, 7
  %v267 = vsub.s32 0, %v266
  %v268 = vrot.slane %v263, %v267
  %v274 = vunpack.c.l.b16 %v259
  %v275 = vunpack.c.l.b16 %v260
  %v276 = vunpack.c.l.b16 %v261
  %v277 = vunpack.c.l.b16 %v262
  %v278 = vpack.c.b16 %v275, %v274
  %v279 = vpack.c.b16 %v277, %v276
  %v283 = vsel %vm77, %v258, 0
  %285 = vmatprep.subr.bf16.mxu0 0
  %286 = vmatpush1.bf16.msra.mxu0 %v278
  %287 = vmatprep.subr.bf16.mxu0 0
  %288 = vmatpush1.bf16.msra.mxu0 %v279
  %289 = vmatprep.subr.bf16.mxu0 0
  %290 = vmatpush1.bf16.msra.mxu0 0
  %291 = vmatprep.subr.bf16.mxu0 0
  %292 = vmatpush1.bf16.msra.mxu0 0
  %293 = vmatprep.subr.bf16.mxu0 0
  %294 = vmatpush1.bf16.msra.mxu0 0
  %295 = vmatprep.subr.bf16.mxu0 0
  %296 = vmatpush1.bf16.msra.mxu0 0
  %297 = vmatprep.subr.bf16.mxu0 0
  %298 = vmatpush1.bf16.msra.mxu0 0
  %299 = vmatprep.subr.bf16.mxu0 0
  %300 = vmatpush1.bf16.msra.mxu0 0
  %301 = vmatprep.subr.bf16.mxu0 0
  %302 = vmatpush1.bf16.msra.mxu0 0
  %303 = vmatprep.subr.bf16.mxu0 0
  %304 = vmatpush1.bf16.msra.mxu0 0
  %305 = vmatprep.subr.bf16.mxu0 0
  %306 = vmatpush1.bf16.msra.mxu0 0
  %307 = vmatprep.subr.bf16.mxu0 0
  %308 = vmatpush1.bf16.msra.mxu0 0
  %309 = vmatprep.subr.bf16.mxu0 0
  %310 = vmatpush1.bf16.msra.mxu0 0
  %311 = vmatprep.subr.bf16.mxu0 0
  %312 = vmatpush1.bf16.msra.mxu0 0
  %313 = vmatprep.subr.bf16.mxu0 0
  %314 = vmatpush1.bf16.msra.mxu0 0
  %315 = vmatprep.subr.bf16.mxu0 0
  %316 = vmatpush1.bf16.msra.mxu0 0
  %317 = vmatprep.mubr.bf16.mxu0 0
  %318 = vmatmul.mubr.bf16.gmra.mrb[0].mxu0 %v283
  %v319 = vpop.f32.mrb[0].mxu0
  %v320 = vadd.f32 %v268, %v319
  %v321 = vpop.f32.mrb[0].mxu0
  %v322 = vpop.f32.mrb[0].mxu0
  %v323 = vpop.f32.mrb[0].mxu0
  %324 = vdwg.mxu0
  %v325 = vmax.f32 %v320, 0.0
  %v326 = vpack.c.bf16 %v325, %v325
  %v327 = vld [vmem:[%s10] sm:$0xf]
  %v328 = vld [vmem:[%s10 + $0x4] sm:$0xf]
  %v329 = vld [vmem:[%s10 + $0x8] sm:$0xf]
  %v330 = vld [vmem:[%s10 + $0xc] sm:$0xf]
  %v331 = vld [vmem:[#allocation2] sm:$0x1]
  %v333 = vlaneseq
  %v334 = vshrl.u32 %v333, 7
  %v335 = vsub.s32 0, %v334
  %v336 = vrot.slane %v331, %v335
  %v342 = vunpack.c.l.b16 %v327
  %v343 = vunpack.c.l.b16 %v328
  %v344 = vunpack.c.l.b16 %v329
  %v345 = vunpack.c.l.b16 %v330
  %v346 = vpack.c.b16 %v343, %v342
  %v347 = vpack.c.b16 %v345, %v344
  %v351 = vsel %vm77, %v326, 0
  %353 = vmatprep.subr.bf16.mxu0 0
  %354 = vmatpush1.bf16.msra.mxu0 %v346
  %355 = vmatprep.subr.bf16.mxu0 0
  %356 = vmatpush1.bf16.msra.mxu0 %v347
  %357 = vmatprep.subr.bf16.mxu0 0
  %358 = vmatpush1.bf16.msra.mxu0 0
  %359 = vmatprep.subr.bf16.mxu0 0
  %360 = vmatpush1.bf16.msra.mxu0 0
  %361 = vmatprep.subr.bf16.mxu0 0
  %362 = vmatpush1.bf16.msra.mxu0 0
  %363 = vmatprep.subr.bf16.mxu0 0
  %364 = vmatpush1.bf16.msra.mxu0 0
  %365 = vmatprep.subr.bf16.mxu0 0
  %366 = vmatpush1.bf16.msra.mxu0 0
  %367 = vmatprep.subr.bf16.mxu0 0
  %368 = vmatpush1.bf16.msra.mxu0 0
  %369 = vmatprep.subr.bf16.mxu0 0
  %370 = vmatpush1.bf16.msra.mxu0 0
  %371 = vmatprep.subr.bf16.mxu0 0
  %372 = vmatpush1.bf16.msra.mxu0 0
  %373 = vmatprep.subr.bf16.mxu0 0
  %374 = vmatpush1.bf16.msra.mxu0 0
  %375 = vmatprep.subr.bf16.mxu0 0
  %376 = vmatpush1.bf16.msra.mxu0 0
  %377 = vmatprep.subr.bf16.mxu0 0
  %378 = vmatpush1.bf16.msra.mxu0 0
  %379 = vmatprep.subr.bf16.mxu0 0
  %380 = vmatpush1.bf16.msra.mxu0 0
  %381 = vmatprep.subr.bf16.mxu0 0
  %382 = vmatpush1.bf16.msra.mxu0 0
  %383 = vmatprep.subr.bf16.mxu0 0
  %384 = vmatpush1.bf16.msra.mxu0 0
  %385 = vmatprep.mubr.bf16.mxu0 0
  %386 = vmatmul.mubr.bf16.gmra.mrb[0].mxu0 %v351
  %v387 = vpop.f32.mrb[0].mxu0
  %v388 = vadd.f32 %v336, %v387
  %v389 = vpop.f32.mrb[0].mxu0
  %v390 = vpop.f32.mrb[0].mxu0
  %v391 = vpop.f32.mrb[0].mxu0
  %392 = vdwg.mxu0
  %vm393 = vcmask 1024
  %394 = vst.msk [vmem:[%s12] sm:$0x3] %vm393, %v388
  // Predicated region
  $region50: #{gin_test_forward.3} parent=0 // pred_check
    _
  $region51: #{gin_test_forward.3} parent=0 // pred_check_branch
    %396 = sbr.rel (0) target = $region53
  $region52: #{gin_test_forward.3} parent=0 // pred_region
    _
  $region53: #{gin_test_forward.3} parent=0 // pred_fallthru
    _
  // Predicated region
  $region54: #{gin_test_forward.3} parent=0 // pred_check
    _
  $region55: #{gin_test_forward.3} parent=0 // pred_check_branch
    %398 = sbr.rel (0) target = $region57
  $region56: #{gin_test_forward.3} parent=0 // pred_region
    _
  $region57: #{gin_test_forward.3} parent=0 // pred_fallthru
    _

// kernel: gin_test_forward.2
$region0: #{gin_test_forward.2}
  #allocation0 [shape = 'u32[]', space=smem, size = 0x4, offset = 0x4, fixed_abs, tag = 'smem constant byte address 0x4 - core index']
  #allocation1 [shape = 'u32[144,128]{1,0:T(1,128)}', space=vmem, size = 0x12000, scoped, tag = 'internal scratch']
  #allocation2 [shape = 'f32[128,32]{1,0:T(8,128)}', space=vmem, size = 0x10000, scoped, tag = 'scratch operand']
  #allocation3 [shape = 's32[1]{0}', space=sflag, size = 0x4, scoped, tag = 'scoped memory for gin_test_forward.2']
  #allocation4 [shape = 's32[1]{0:T(128)S(6)}', space=smem, size = 0x200, scoped, tag = 'prefetched SMEM operand 0']
  #allocation5 [shape = 's32[1]{0:T(128)S(6)}', space=smem, size = 0x200, scoped, tag = 'prefetched SMEM operand 1']
  %s0 = inlined_call_operand.<no memory space> [shape: s32[1], index: 0, kind: input, shape index: {}]
  %s1 = inlined_call_operand.<no memory space> [shape: s32[1], index: 1, kind: input, shape index: {}]
  %s2 = inlined_call_operand.vmem [shape: bf16[128,128], index: 2, kind: input, shape index: {}]
  %s3 = inlined_call_operand.vmem [shape: bf16[128,32], index: 3, kind: input, shape index: {}]
  %s4 = inlined_call_operand.vmem [shape: s32[1,128], index: 4, kind: input, shape index: {}]
  %s5 = inlined_call_operand.vmem [shape: bf16[32,32], index: 5, kind: input, shape index: {}]
  %s6 = inlined_call_operand.vmem [shape: f32[1,32], index: 6, kind: input, shape index: {}]
  %s7 = inlined_call_operand.vmem [shape: bf16[32,32], index: 7, kind: input, shape index: {}]
  %s8 = inlined_call_operand.vmem [shape: f32[1,32], index: 8, kind: input, shape index: {}]
  %s9 = inlined_call_operand.vmem [shape: f32[1,2,32], index: 9, kind: output, shape index: {}]
  %s10 = sld [smem:[#allocation0]]
  $region54: #{gin_test_forward.2} parent=0
    _
  %s12 = ssub.s32 1, %s10
  %s13 = scalar_select 0, %s12, %s10
  %14 = sst [smem:[#allocation4]] %s0
  %15 = sst [smem:[#allocation5]] %s1
  // Predicated region
  $region2: #{gin_test_forward.2} parent=0 // pred_check
    _
  $region3: #{gin_test_forward.2} parent=0 // pred_check_branch
    %17 = sbr.rel (0) target = $region5
  $region4: #{gin_test_forward.2} parent=0 // pred_region
    %s18 = sld [smem:[#allocation4]]
    %s19 = sld [smem:[#allocation5]]
    %s20 = ssub.s32 %s19, 1
    %p21 = scmp.lt.s32.totalorder 0, %s20
    %s22 = scalar_select %p21, 0, %s20
    %s23 = sadd.s32 %s18, %s22
    %p24 = scmp.lt.s32.totalorder %s23, 0
    %s25 = scalar_select %p24, %s23, 0
    %s26 = smul.addr %s25, 4
    %s27 = scalar_lea.vmem %s2, %s26
    %s28 = sld [smem:[#allocation4]]
    %s29 = sld [smem:[#allocation5]]
    %s30 = ssub.s32 %s29, 1
    %p31 = scmp.lt.s32.totalorder 0, %s30
    %s32 = scalar_select %p31, 0, %s30
    %s33 = sadd.s32 %s28, %s32
  $region5: #{gin_test_forward.2} parent=0 // pred_fallthru
    _
  // Predicated region
  $region6: #{gin_test_forward.2} parent=0 // pred_check
    _
  $region7: #{gin_test_forward.2} parent=0 // pred_check_branch
    %35 = sbr.rel (0) target = $region9
  $region8: #{gin_test_forward.2} parent=0 // pred_region
    %s36 = sld [smem:[#allocation4]]
    %s37 = sld [smem:[#allocation5]]
    %s38 = ssub.s32 %s37, 1
    %p39 = scmp.lt.s32.totalorder 0, %s38
    %s40 = scalar_select %p39, 0, %s38
    %s41 = sadd.s32 %s36, %s40
    %s42 = smul.u32 16, %s41
    %p43 = scmp.lt.s32.totalorder %s42, 15
    %s44 = scalar_select %p43, %s42, 15
    %s45 = smul.addr %s44, 4
    %s46 = scalar_lea.vmem %s3, %s45
    %s47 = sld [smem:[#allocation4]]
    %s48 = sld [smem:[#allocation5]]
    %s49 = ssub.s32 %s48, 1
    %p50 = scmp.lt.s32.totalorder 0, %s49
    %s51 = scalar_select %p50, 0, %s49
    %s52 = sadd.s32 %s47, %s51
    %s53 = smul.u32 16, %s52
  $region9: #{gin_test_forward.2} parent=0 // pred_fallthru
    _
  // Predicated region
  $region10: #{gin_test_forward.2} parent=0 // pred_check
    _
  $region11: #{gin_test_forward.2} parent=0 // pred_check_branch
    %55 = sbr.rel (0) target = $region13
  $region12: #{gin_test_forward.2} parent=0 // pred_region
    _
  $region13: #{gin_test_forward.2} parent=0 // pred_fallthru
    _
  // Predicated region
  $region14: #{gin_test_forward.2} parent=0 // pred_check
    _
  $region15: #{gin_test_forward.2} parent=0 // pred_check_branch
    %57 = sbr.rel (0) target = $region17
  $region16: #{gin_test_forward.2} parent=0 // pred_region
    _
  $region17: #{gin_test_forward.2} parent=0 // pred_fallthru
    _
  // Predicated region
  $region18: #{gin_test_forward.2} parent=0 // pred_check
    _
  $region19: #{gin_test_forward.2} parent=0 // pred_check_branch
    %59 = sbr.rel (0) target = $region21
  $region20: #{gin_test_forward.2} parent=0 // pred_region
    _
  $region21: #{gin_test_forward.2} parent=0 // pred_fallthru
    _
  // Predicated region
  $region22: #{gin_test_forward.2} parent=0 // pred_check
    _
  $region23: #{gin_test_forward.2} parent=0 // pred_check_branch
    %61 = sbr.rel (0) target = $region25
  $region24: #{gin_test_forward.2} parent=0 // pred_region
    _
  $region25: #{gin_test_forward.2} parent=0 // pred_fallthru
    _
  // Predicated region
  $region26: #{gin_test_forward.2} parent=0 // pred_check
    _
  $region27: #{gin_test_forward.2} parent=0 // pred_check_branch
    %63 = sbr.rel (0) target = $region29
  $region28: #{gin_test_forward.2} parent=0 // pred_region
    _
  $region29: #{gin_test_forward.2} parent=0 // pred_fallthru
    _
  %s64 = sld [smem:[#allocation4]]
  %s65 = sld [smem:[#allocation5]]
  %s66 = ssub.s32 %s65, 1
  %p67 = scmp.lt.s32.totalorder 0, %s66
  %s68 = scalar_select %p67, 0, %s66
  %s69 = sadd.s32 %s64, %s68
  %p70 = scmp.lt.s32.totalorder %s69, 0
  %s71 = scalar_select %p70, %s69, 0
  %s72 = smul.addr %s71, 4
  %s73 = scalar_lea.vmem %s2, %s72
  %s74 = sld [smem:[#allocation4]]
  %s75 = sld [smem:[#allocation5]]
  %s76 = ssub.s32 %s75, 1
  %p77 = scmp.lt.s32.totalorder 0, %s76
  %s78 = scalar_select %p77, 0, %s76
  %s79 = sadd.s32 %s74, %s78
  %s80 = smul.u32 16, %s79
  %p81 = scmp.lt.s32.totalorder %s80, 15
  %s82 = scalar_select %p81, %s80, 15
  %s83 = smul.addr %s82, 4
  %s84 = scalar_lea.vmem %s3, %s83
  %s85 = sld [smem:[#allocation4]]
  %s86 = sld [smem:[#allocation5]]
  %s87 = ssub.s32 %s86, 1
  %p88 = scmp.lt.s32.totalorder 0, %s87
  %s89 = scalar_select %p88, 0, %s87
  %s90 = sadd.s32 %s85, %s89
  %p91 = scmp.lt.s32.totalorder %s90, 0
  %s92 = scalar_select %p91, %s90, 0
  %s93 = smul.addr %s92, 4
  %s94 = scalar_lea.vmem %s2, %s93
  %s95 = sld [smem:[#allocation4]]
  %s96 = sld [smem:[#allocation5]]
  %s97 = ssub.s32 %s96, 1
  %p98 = scmp.lt.s32.totalorder 0, %s97
  %s99 = scalar_select %p98, 0, %s97
  %s100 = sadd.s32 %s95, %s99
  %s101 = sld [smem:[#allocation4]]
  %s102 = sld [smem:[#allocation5]]
  %s103 = ssub.s32 %s102, 1
  %p104 = scmp.lt.s32.totalorder 0, %s103
  %s105 = scalar_select %p104, 0, %s103
  %s106 = sadd.s32 %s101, %s105
  %s107 = smul.u32 16, %s106
  %p108 = scmp.lt.s32.totalorder %s107, 15
  %s109 = scalar_select %p108, %s107, 15
  %s110 = smul.addr %s109, 4
  %s111 = scalar_lea.vmem %s3, %s110
  %s112 = sld [smem:[#allocation4]]
  %s113 = sld [smem:[#allocation5]]
  %s114 = ssub.s32 %s113, 1
  %p115 = scmp.lt.s32.totalorder 0, %s114
  %s116 = scalar_select %p115, 0, %s114
  %s117 = sadd.s32 %s112, %s116
  %s118 = smul.u32 16, %s117
  %s120 = sld [smem:[#allocation5]]
  %s121 = sld [smem:[#allocation4]]
  %s122 = sadd.s32 %s121, 0
  %p123 = scmp.eq.s32.totalorder 0, 0
  // Predicated region
  $region30: #{gin_test_forward.2} parent=0 // pred_check
    %p124 = pneg %p123
  $region31: #{gin_test_forward.2} parent=0 // pred_check_branch
    %126 = sbr.rel (%p124) target = $region33
  $region32: #{gin_test_forward.2} parent=0 // pred_region
    %vm127 = vcmask 261120
    %128 = vst.msk [vmem:[#allocation2] sm:$0xff] %vm127, 0.0
    %129 = vst.msk [vmem:[#allocation2 + $0x8] sm:$0xff] %vm127, 0.0
    %130 = vst.msk [vmem:[#allocation2 + $0x10] sm:$0xff] %vm127, 0.0
    %131 = vst.msk [vmem:[#allocation2 + $0x18] sm:$0xff] %vm127, 0.0
    %132 = vst.msk [vmem:[#allocation2 + $0x20] sm:$0xff] %vm127, 0.0
    %133 = vst.msk [vmem:[#allocation2 + $0x28] sm:$0xff] %vm127, 0.0
    %134 = vst.msk [vmem:[#allocation2 + $0x30] sm:$0xff] %vm127, 0.0
    %135 = vst.msk [vmem:[#allocation2 + $0x38] sm:$0xff] %vm127, 0.0
    %136 = vst.msk [vmem:[#allocation2 + $0x40] sm:$0xff] %vm127, 0.0
    %137 = vst.msk [vmem:[#allocation2 + $0x48] sm:$0xff] %vm127, 0.0
    %138 = vst.msk [vmem:[#allocation2 + $0x50] sm:$0xff] %vm127, 0.0
    %139 = vst.msk [vmem:[#allocation2 + $0x58] sm:$0xff] %vm127, 0.0
    %140 = vst.msk [vmem:[#allocation2 + $0x60] sm:$0xff] %vm127, 0.0
    %141 = vst.msk [vmem:[#allocation2 + $0x68] sm:$0xff] %vm127, 0.0
    %142 = vst.msk [vmem:[#allocation2 + $0x70] sm:$0xff] %vm127, 0.0
    %143 = vst.msk [vmem:[#allocation2 + $0x78] sm:$0xff] %vm127, 0.0
  $region33: #{gin_test_forward.2} parent=0 // pred_fallthru
    _
  %p144 = scmp.lt.s32.totalorder 0, %s120
  // Predicated region
  $region34: #{gin_test_forward.2} parent=0 // pred_check
    %p145 = pneg %p144
  $region35: #{gin_test_forward.2} parent=0 // pred_check_branch
    %147 = sbr.rel (%p145) target = $region37
  $region36: #{gin_test_forward.2} parent=0 // pred_region
    %v148 = vld [vmem:[#allocation2] sm:$0xff]
    %v149 = vld [vmem:[#allocation2 + $0x8] sm:$0xff]
    %v150 = vld [vmem:[#allocation2 + $0x10] sm:$0xff]
    %v151 = vld [vmem:[#allocation2 + $0x18] sm:$0xff]
    %v152 = vld [vmem:[#allocation2 + $0x20] sm:$0xff]
    %v153 = vld [vmem:[#allocation2 + $0x28] sm:$0xff]
    %v154 = vld [vmem:[#allocation2 + $0x30] sm:$0xff]
    %v155 = vld [vmem:[#allocation2 + $0x38] sm:$0xff]
    %v156 = vld [vmem:[#allocation2 + $0x40] sm:$0xff]
    %v157 = vld [vmem:[#allocation2 + $0x48] sm:$0xff]
    %v158 = vld [vmem:[#allocation2 + $0x50] sm:$0xff]
    %v159 = vld [vmem:[#allocation2 + $0x58] sm:$0xff]
    %v160 = vld [vmem:[#allocation2 + $0x60] sm:$0xff]
    %v161 = vld [vmem:[#allocation2 + $0x68] sm:$0xff]
    %v162 = vld [vmem:[#allocation2 + $0x70] sm:$0xff]
    %v163 = vld [vmem:[#allocation2 + $0x78] sm:$0xff]
    %v164 = vld [vmem:[%s94] sm:$0xf]
    %v165 = vld [vmem:[%s94 + $0x4] sm:$0xf]
    %v166 = vld [vmem:[%s94 + $0x8] sm:$0xf]
    %v167 = vld [vmem:[%s94 + $0xc] sm:$0xf]
    %v168 = vld [vmem:[%s94 + $0x10] sm:$0xf]
    %v169 = vld [vmem:[%s94 + $0x14] sm:$0xf]
    %v170 = vld [vmem:[%s94 + $0x18] sm:$0xf]
    %v171 = vld [vmem:[%s94 + $0x1c] sm:$0xf]
    %v172 = vld [vmem:[%s94 + $0x20] sm:$0xf]
    %v173 = vld [vmem:[%s94 + $0x24] sm:$0xf]
    %v174 = vld [vmem:[%s94 + $0x28] sm:$0xf]
    %v175 = vld [vmem:[%s94 + $0x2c] sm:$0xf]
    %v176 = vld [vmem:[%s94 + $0x30] sm:$0xf]
    %v177 = vld [vmem:[%s94 + $0x34] sm:$0xf]
    %v178 = vld [vmem:[%s94 + $0x38] sm:$0xf]
    %v179 = vld [vmem:[%s94 + $0x3c] sm:$0xf]
    %v180 = vld [vmem:[%s111] sm:$0xf]
    %v181 = vld [vmem:[%s111 + $0x4] sm:$0xf]
    %v182 = vld [vmem:[%s111 + $0x8] sm:$0xf]
    %v183 = vld [vmem:[%s111 + $0xc] sm:$0xf]
    %v184 = vld [vmem:[%s111 + $0x10] sm:$0xf]
    %v185 = vld [vmem:[%s111 + $0x14] sm:$0xf]
    %v186 = vld [vmem:[%s111 + $0x18] sm:$0xf]
    %v187 = vld [vmem:[%s111 + $0x1c] sm:$0xf]
    %v188 = vld [vmem:[%s111 + $0x20] sm:$0xf]
    %v189 = vld [vmem:[%s111 + $0x24] sm:$0xf]
    %v190 = vld [vmem:[%s111 + $0x28] sm:$0xf]
    %v191 = vld [vmem:[%s111 + $0x2c] sm:$0xf]
    %v192 = vld [vmem:[%s111 + $0x30] sm:$0xf]
    %v193 = vld [vmem:[%s111 + $0x34] sm:$0xf]
    %v194 = vld [vmem:[%s111 + $0x38] sm:$0xf]
    %v195 = vld [vmem:[%s111 + $0x3c] sm:$0xf]
    %v212 = vunpack.c.l.b16 %v164
    %v213 = vunpack.c.l.b16 %v165
    %v214 = vunpack.c.l.b16 %v166
    %v215 = vunpack.c.l.b16 %v167
    %v216 = vunpack.c.l.b16 %v168
    %v217 = vunpack.c.l.b16 %v169
    %v218 = vunpack.c.l.b16 %v170
    %v219 = vunpack.c.l.b16 %v171
    %v220 = vunpack.c.l.b16 %v172
    %v221 = vunpack.c.l.b16 %v173
    %v222 = vunpack.c.l.b16 %v174
    %v223 = vunpack.c.l.b16 %v175
    %v224 = vunpack.c.l.b16 %v176
    %v225 = vunpack.c.l.b16 %v177
    %v226 = vunpack.c.l.b16 %v178
    %v227 = vunpack.c.l.b16 %v179
    %v228 = vpack.c.b16 %v213, %v212
    %v229 = vpack.c.b16 %v215, %v214
    %v230 = vpack.c.b16 %v217, %v216
    %v231 = vpack.c.b16 %v219, %v218
    %v232 = vpack.c.b16 %v221, %v220
    %v233 = vpack.c.b16 %v223, %v222
    %v234 = vpack.c.b16 %v225, %v224
    %v235 = vpack.c.b16 %v227, %v226
    %v260 = vunpack.c.l.b16 %v180
    %v261 = vunpack.c.l.b16 %v181
    %v262 = vunpack.c.l.b16 %v182
    %v263 = vunpack.c.l.b16 %v183
    %v264 = vunpack.c.l.b16 %v184
    %v265 = vunpack.c.l.b16 %v185
    %v266 = vunpack.c.l.b16 %v186
    %v267 = vunpack.c.l.b16 %v187
    %v268 = vunpack.c.l.b16 %v188
    %v269 = vunpack.c.l.b16 %v189
    %v270 = vunpack.c.l.b16 %v190
    %v271 = vunpack.c.l.b16 %v191
    %v272 = vunpack.c.l.b16 %v192
    %v273 = vunpack.c.l.b16 %v193
    %v274 = vunpack.c.l.b16 %v194
    %v275 = vunpack.c.l.b16 %v195
    %v276 = vpack.c.b16 %v261, %v260
    %v277 = vpack.c.b16 %v263, %v262
    %v278 = vpack.c.b16 %v265, %v264
    %v279 = vpack.c.b16 %v267, %v266
    %v280 = vpack.c.b16 %v269, %v268
    %v281 = vpack.c.b16 %v271, %v270
    %v282 = vpack.c.b16 %v273, %v272
    %v283 = vpack.c.b16 %v275, %v274
    %292 = vmatprep.subr.bf16.mxu0 0
    %293 = vmatpush1.bf16.msra.mxu0 %v276
    %294 = vmatprep.subr.bf16.mxu0 0
    %295 = vmatpush1.bf16.msra.mxu0 %v277
    %296 = vmatprep.subr.bf16.mxu0 0
    %297 = vmatpush1.bf16.msra.mxu0 %v278
    %298 = vmatprep.subr.bf16.mxu0 0
    %299 = vmatpush1.bf16.msra.mxu0 %v279
    %300 = vmatprep.subr.bf16.mxu0 0
    %301 = vmatpush1.bf16.msra.mxu0 %v280
    %302 = vmatprep.subr.bf16.mxu0 0
    %303 = vmatpush1.bf16.msra.mxu0 %v281
    %304 = vmatprep.subr.bf16.mxu0 0
    %305 = vmatpush1.bf16.msra.mxu0 %v282
    %306 = vmatprep.subr.bf16.mxu0 0
    %307 = vmatpush1.bf16.msra.mxu0 %v283
    %308 = vmatprep.subr.bf16.mxu0 0
    %309 = vmatpush1.bf16.msra.mxu0 0
    %310 = vmatprep.subr.bf16.mxu0 0
    %311 = vmatpush1.bf16.msra.mxu0 0
    %312 = vmatprep.subr.bf16.mxu0 0
    %313 = vmatpush1.bf16.msra.mxu0 0
    %314 = vmatprep.subr.bf16.mxu0 0
    %315 = vmatpush1.bf16.msra.mxu0 0
    %316 = vmatprep.subr.bf16.mxu0 0
    %317 = vmatpush1.bf16.msra.mxu0 0
    %318 = vmatprep.subr.bf16.mxu0 0
    %319 = vmatpush1.bf16.msra.mxu0 0
    %320 = vmatprep.subr.bf16.mxu0 0
    %321 = vmatpush1.bf16.msra.mxu0 0
    %322 = vmatprep.subr.bf16.mxu0 0
    %323 = vmatpush1.bf16.msra.mxu0 0
    %324 = vmatprep.mubr.bf16.mxu0 0
    %325 = vmatmul.mubr.bf16.gmra.mrb[0].mxu0 %v228
    %v326 = vpop.f32.mrb[0].mxu0
    %v327 = vadd.f32 0.0, %v326
    %v328 = vpop.f32.mrb[0].mxu0
    %v329 = vpop.f32.mrb[0].mxu0
    %v330 = vadd.f32 0.0, %v329
    %v331 = vpop.f32.mrb[0].mxu0
    %332 = vmatprep.mubr.bf16.mxu0 0
    %333 = vmatmul.mubr.bf16.gmra.mrb[0].mxu0 %v229
    %v334 = vpop.f32.mrb[0].mxu0
    %v335 = vadd.f32 0.0, %v334
    %v336 = vpop.f32.mrb[0].mxu0
    %v337 = vpop.f32.mrb[0].mxu0
    %v338 = vadd.f32 0.0, %v337
    %v339 = vpop.f32.mrb[0].mxu0
    %340 = vmatprep.mubr.bf16.mxu0 0
    %341 = vmatmul.mubr.bf16.gmra.mrb[0].mxu0 %v230
    %v342 = vpop.f32.mrb[0].mxu0
    %v343 = vadd.f32 0.0, %v342
    %v344 = vpop.f32.mrb[0].mxu0
    %v345 = vpop.f32.mrb[0].mxu0
    %v346 = vadd.f32 0.0, %v345
    %v347 = vpop.f32.mrb[0].mxu0
    %348 = vmatprep.mubr.bf16.mxu0 0
    %349 = vmatmul.mubr.bf16.gmra.mrb[0].mxu0 %v231
    %v350 = vpop.f32.mrb[0].mxu0
    %v351 = vadd.f32 0.0, %v350
    %v352 = vpop.f32.mrb[0].mxu0
    %v353 = vpop.f32.mrb[0].mxu0
    %v354 = vadd.f32 0.0, %v353
    %v355 = vpop.f32.mrb[0].mxu0
    %356 = vmatprep.mubr.bf16.mxu0 0
    %357 = vmatmul.mubr.bf16.gmra.mrb[0].mxu0 %v232
    %v358 = vpop.f32.mrb[0].mxu0
    %v359 = vadd.f32 0.0, %v358
    %v360 = vpop.f32.mrb[0].mxu0
    %v361 = vpop.f32.mrb[0].mxu0
    %v362 = vadd.f32 0.0, %v361
    %v363 = vpop.f32.mrb[0].mxu0
    %364 = vmatprep.mubr.bf16.mxu0 0
    %365 = vmatmul.mubr.bf16.gmra.mrb[0].mxu0 %v233
    %v366 = vpop.f32.mrb[0].mxu0
    %v367 = vadd.f32 0.0, %v366
    %v368 = vpop.f32.mrb[0].mxu0
    %v369 = vpop.f32.mrb[0].mxu0
    %v370 = vadd.f32 0.0, %v369
    %v371 = vpop.f32.mrb[0].mxu0
    %372 = vmatprep.mubr.bf16.mxu0 0
    %373 = vmatmul.mubr.bf16.gmra.mrb[0].mxu0 %v234
    %v374 = vpop.f32.mrb[0].mxu0
    %v375 = vadd.f32 0.0, %v374
    %v376 = vpop.f32.mrb[0].mxu0
    %v377 = vpop.f32.mrb[0].mxu0
    %v378 = vadd.f32 0.0, %v377
    %v379 = vpop.f32.mrb[0].mxu0
    %380 = vmatprep.mubr.bf16.mxu0 0
    %381 = vmatmul.mubr.bf16.gmra.mrb[0].mxu0 %v235
    %v382 = vpop.f32.mrb[0].mxu0
    %v383 = vadd.f32 0.0, %v382
    %v384 = vpop.f32.mrb[0].mxu0
    %v385 = vpop.f32.mrb[0].mxu0
    %v386 = vadd.f32 0.0, %v385
    %v387 = vpop.f32.mrb[0].mxu0
    %388 = vdwg.mxu0
    %v389 = vadd.f32 %v148, %v327
    %v390 = vadd.f32 %v149, %v330
    %v391 = vadd.f32 %v150, %v335
    %v392 = vadd.f32 %v151, %v338
    %v393 = vadd.f32 %v152, %v343
    %v394 = vadd.f32 %v153, %v346
    %v395 = vadd.f32 %v154, %v351
    %v396 = vadd.f32 %v155, %v354
    %v397 = vadd.f32 %v156, %v359
    %v398 = vadd.f32 %v157, %v362
    %v399 = vadd.f32 %v158, %v367
    %v400 = vadd.f32 %v159, %v370
    %v401 = vadd.f32 %v160, %v375
    %v402 = vadd.f32 %v161, %v378
    %v403 = vadd.f32 %v162, %v383
    %v404 = vadd.f32 %v163, %v386
    %vm405 = vcmask 261120
    %406 = vst.msk [vmem:[#allocation2] sm:$0xff] %vm405, %v389
    %407 = vst.msk [vmem:[#allocation2 + $0x8] sm:$0xff] %vm405, %v390
    %408 = vst.msk [vmem:[#allocation2 + $0x10] sm:$0xff] %vm405, %v391
    %409 = vst.msk [vmem:[#allocation2 + $0x18] sm:$0xff] %vm405, %v392
    %410 = vst.msk [vmem:[#allocation2 + $0x20] sm:$0xff] %vm405, %v393
    %411 = vst.msk [vmem:[#allocation2 + $0x28] sm:$0xff] %vm405, %v394
    %412 = vst.msk [vmem:[#allocation2 + $0x30] sm:$0xff] %vm405, %v395
    %413 = vst.msk [vmem:[#allocation2 + $0x38] sm:$0xff] %vm405, %v396
    %414 = vst.msk [vmem:[#allocation2 + $0x40] sm:$0xff] %vm405, %v397
    %415 = vst.msk [vmem:[#allocation2 + $0x48] sm:$0xff] %vm405, %v398
    %416 = vst.msk [vmem:[#allocation2 + $0x50] sm:$0xff] %vm405, %v399
    %417 = vst.msk [vmem:[#allocation2 + $0x58] sm:$0xff] %vm405, %v400
    %418 = vst.msk [vmem:[#allocation2 + $0x60] sm:$0xff] %vm405, %v401
    %419 = vst.msk [vmem:[#allocation2 + $0x68] sm:$0xff] %vm405, %v402
    %420 = vst.msk [vmem:[#allocation2 + $0x70] sm:$0xff] %vm405, %v403
    %421 = vst.msk [vmem:[#allocation2 + $0x78] sm:$0xff] %vm405, %v404
    %p422 = scmp.eq.s32.totalorder %s122, 0
    // Predicated region
    $region38: #{gin_test_forward.2} parent=36 // pred_check
      %p423 = pneg %p422
    $region39: #{gin_test_forward.2} parent=36 // pred_check_branch
      %425 = sbr.rel (%p423) target = $region41
    $region40: #{gin_test_forward.2} parent=36 // pred_region
      %v426 = vld [vmem:[#allocation2] sm:$0xff]
      %v427 = vld [vmem:[#allocation2 + $0x8] sm:$0xff]
      %v428 = vld [vmem:[#allocation2 + $0x10] sm:$0xff]
      %v429 = vld [vmem:[#allocation2 + $0x18] sm:$0xff]
      %v430 = vld [vmem:[#allocation2 + $0x20] sm:$0xff]
      %v431 = vld [vmem:[#allocation2 + $0x28] sm:$0xff]
      %v432 = vld [vmem:[#allocation2 + $0x30] sm:$0xff]
      %v433 = vld [vmem:[#allocation2 + $0x38] sm:$0xff]
      %v434 = vld [vmem:[#allocation2 + $0x40] sm:$0xff]
      %v435 = vld [vmem:[#allocation2 + $0x48] sm:$0xff]
      %v436 = vld [vmem:[#allocation2 + $0x50] sm:$0xff]
      %v437 = vld [vmem:[#allocation2 + $0x58] sm:$0xff]
      %v438 = vld [vmem:[#allocation2 + $0x60] sm:$0xff]
      %v439 = vld [vmem:[#allocation2 + $0x68] sm:$0xff]
      %v440 = vld [vmem:[#allocation2 + $0x70] sm:$0xff]
      %v441 = vld [vmem:[#allocation2 + $0x78] sm:$0xff]
      %v442 = vld [vmem:[%s111] sm:$0xf]
      %v443 = vld [vmem:[%s111 + $0x4] sm:$0xf]
      %v444 = vld [vmem:[%s111 + $0x8] sm:$0xf]
      %v445 = vld [vmem:[%s111 + $0xc] sm:$0xf]
      %v446 = vld [vmem:[%s111 + $0x10] sm:$0xf]
      %v447 = vld [vmem:[%s111 + $0x14] sm:$0xf]
      %v448 = vld [vmem:[%s111 + $0x18] sm:$0xf]
      %v449 = vld [vmem:[%s111 + $0x1c] sm:$0xf]
      %v450 = vld [vmem:[%s111 + $0x20] sm:$0xf]
      %v451 = vld [vmem:[%s111 + $0x24] sm:$0xf]
      %v452 = vld [vmem:[%s111 + $0x28] sm:$0xf]
      %v453 = vld [vmem:[%s111 + $0x2c] sm:$0xf]
      %v454 = vld [vmem:[%s111 + $0x30] sm:$0xf]
      %v455 = vld [vmem:[%s111 + $0x34] sm:$0xf]
      %v456 = vld [vmem:[%s111 + $0x38] sm:$0xf]
      %v457 = vld [vmem:[%s111 + $0x3c] sm:$0xf]
      %v458 = vunpack.c.l.bf16 %v442
      %v459 = vunpack.c.l.bf16 %v443
      %v460 = vunpack.c.l.bf16 %v444
      %v461 = vunpack.c.l.bf16 %v445
      %v462 = vunpack.c.l.bf16 %v446
      %v463 = vunpack.c.l.bf16 %v447
      %v464 = vunpack.c.l.bf16 %v448
      %v465 = vunpack.c.l.bf16 %v449
      %v466 = vunpack.c.l.bf16 %v450
      %v467 = vunpack.c.l.bf16 %v451
      %v468 = vunpack.c.l.bf16 %v452
      %v469 = vunpack.c.l.bf16 %v453
      %v470 = vunpack.c.l.bf16 %v454
      %v471 = vunpack.c.l.bf16 %v455
      %v472 = vunpack.c.l.bf16 %v456
      %v473 = vunpack.c.l.bf16 %v457
      %v474 = vmul.f32 %v458, 1.01
      %v475 = vmul.f32 %v459, 1.01
      %v476 = vmul.f32 %v460, 1.01
      %v477 = vmul.f32 %v461, 1.01
      %v478 = vmul.f32 %v462, 1.01
      %v479 = vmul.f32 %v463, 1.01
      %v480 = vmul.f32 %v464, 1.01
      %v481 = vmul.f32 %v465, 1.01
      %v482 = vmul.f32 %v466, 1.01
      %v483 = vmul.f32 %v467, 1.01
      %v484 = vmul.f32 %v468, 1.01
      %v485 = vmul.f32 %v469, 1.01
      %v486 = vmul.f32 %v470, 1.01
      %v487 = vmul.f32 %v471, 1.01
      %v488 = vmul.f32 %v472, 1.01
      %v489 = vmul.f32 %v473, 1.01
      %v490 = vadd.f32 %v426, %v474
      %v491 = vadd.f32 %v427, %v475
      %v492 = vadd.f32 %v428, %v476
      %v493 = vadd.f32 %v429, %v477
      %v494 = vadd.f32 %v430, %v478
      %v495 = vadd.f32 %v431, %v479
      %v496 = vadd.f32 %v432, %v480
      %v497 = vadd.f32 %v433, %v481
      %v498 = vadd.f32 %v434, %v482
      %v499 = vadd.f32 %v435, %v483
      %v500 = vadd.f32 %v436, %v484
      %v501 = vadd.f32 %v437, %v485
      %v502 = vadd.f32 %v438, %v486
      %v503 = vadd.f32 %v439, %v487
      %v504 = vadd.f32 %v440, %v488
      %v505 = vadd.f32 %v441, %v489
      %506 = vst.msk [vmem:[#allocation2] sm:$0xff] %vm405, %v490
      %507 = vst.msk [vmem:[#allocation2 + $0x8] sm:$0xff] %vm405, %v491
      %508 = vst.msk [vmem:[#allocation2 + $0x10] sm:$0xff] %vm405, %v492
      %509 = vst.msk [vmem:[#allocation2 + $0x18] sm:$0xff] %vm405, %v493
      %510 = vst.msk [vmem:[#allocation2 + $0x20] sm:$0xff] %vm405, %v494
      %511 = vst.msk [vmem:[#allocation2 + $0x28] sm:$0xff] %vm405, %v495
      %512 = vst.msk [vmem:[#allocation2 + $0x30] sm:$0xff] %vm405, %v496
      %513 = vst.msk [vmem:[#allocation2 + $0x38] sm:$0xff] %vm405, %v497
      %514 = vst.msk [vmem:[#allocation2 + $0x40] sm:$0xff] %vm405, %v498
      %515 = vst.msk [vmem:[#allocation2 + $0x48] sm:$0xff] %vm405, %v499
      %516 = vst.msk [vmem:[#allocation2 + $0x50] sm:$0xff] %vm405, %v500
      %517 = vst.msk [vmem:[#allocation2 + $0x58] sm:$0xff] %vm405, %v501
      %518 = vst.msk [vmem:[#allocation2 + $0x60] sm:$0xff] %vm405, %v502
      %519 = vst.msk [vmem:[#allocation2 + $0x68] sm:$0xff] %vm405, %v503
      %520 = vst.msk [vmem:[#allocation2 + $0x70] sm:$0xff] %vm405, %v504
      %521 = vst.msk [vmem:[#allocation2 + $0x78] sm:$0xff] %vm405, %v505
    $region41: #{gin_test_forward.2} parent=36 // pred_fallthru
      _
  $region37: #{gin_test_forward.2} parent=0 // pred_fallthru
    _
  %s522 = ssub.s32 %s120, 1
  %p523 = scmp.eq.s32.totalorder 0, %s522
  // Predicated region
  $region42: #{gin_test_forward.2} parent=0 // pred_check
    %p524 = pneg %p523
  $region43: #{gin_test_forward.2} parent=0 // pred_check_branch
    %526 = sbr.rel (%p524) target = $region45
  $region44: #{gin_test_forward.2} parent=0 // pred_region
    %v527 = vld [vmem:[#allocation2] sm:$0xff]
    %v528 = vld [vmem:[#allocation2 + $0x8] sm:$0xff]
    %v529 = vld [vmem:[#allocation2 + $0x10] sm:$0xff]
    %v530 = vld [vmem:[#allocation2 + $0x18] sm:$0xff]
    %v531 = vld [vmem:[#allocation2 + $0x20] sm:$0xff]
    %v532 = vld [vmem:[#allocation2 + $0x28] sm:$0xff]
    %v533 = vld [vmem:[#allocation2 + $0x30] sm:$0xff]
    %v534 = vld [vmem:[#allocation2 + $0x38] sm:$0xff]
    %v535 = vld [vmem:[#allocation2 + $0x40] sm:$0xff]
    %v536 = vld [vmem:[#allocation2 + $0x48] sm:$0xff]
    %v537 = vld [vmem:[#allocation2 + $0x50] sm:$0xff]
    %v538 = vld [vmem:[#allocation2 + $0x58] sm:$0xff]
    %v539 = vld [vmem:[#allocation2 + $0x60] sm:$0xff]
    %v540 = vld [vmem:[#allocation2 + $0x68] sm:$0xff]
    %v541 = vld [vmem:[#allocation2 + $0x70] sm:$0xff]
    %v542 = vld [vmem:[#allocation2 + $0x78] sm:$0xff]
    %v543 = vpack.c.bf16 %v528, %v527
    %v544 = vpack.c.bf16 %v530, %v529
    %v545 = vpack.c.bf16 %v532, %v531
    %v546 = vpack.c.bf16 %v534, %v533
    %v547 = vpack.c.bf16 %v536, %v535
    %v548 = vpack.c.bf16 %v538, %v537
    %v549 = vpack.c.bf16 %v540, %v539
    %v550 = vpack.c.bf16 %v542, %v541
    %v551 = vld [vmem:[%s5] sm:$0xf]
    %v552 = vld [vmem:[%s5 + $0x4] sm:$0xf]
    %v553 = vld [vmem:[%s5 + $0x8] sm:$0xf]
    %v554 = vld [vmem:[%s5 + $0xc] sm:$0xf]
    %v555 = vld [vmem:[%s6] sm:$0x1]
    %v557 = vlaneseq
    %v558 = vshrl.u32 %v557, 7
    %v559 = vsub.s32 0, %v558
    %v560 = vrot.slane %v555, %v559
    %v566 = vunpack.c.l.b16 %v551
    %v567 = vunpack.c.l.b16 %v552
    %v568 = vunpack.c.l.b16 %v553
    %v569 = vunpack.c.l.b16 %v554
    %v570 = vpack.c.b16 %v567, %v566
    %v571 = vpack.c.b16 %v569, %v568
    %vm574 = vcmask 261120
    %v576 = vsel %vm574, %v543, 0
    %v579 = vsel %vm574, %v544, 0
    %v582 = vsel %vm574, %v545, 0
    %v585 = vsel %vm574, %v546, 0
    %v588 = vsel %vm574, %v547, 0
    %v591 = vsel %vm574, %v548, 0
    %v594 = vsel %vm574, %v549, 0
    %v597 = vsel %vm574, %v550, 0
    %599 = vmatprep.subr.bf16.mxu0 0
    %600 = vmatpush1.bf16.msra.mxu0 %v570
    %601 = vmatprep.subr.bf16.mxu0 0
    %602 = vmatpush1.bf16.msra.mxu0 %v571
    %603 = vmatprep.subr.bf16.mxu0 0
    %604 = vmatpush1.bf16.msra.mxu0 0
    %605 = vmatprep.subr.bf16.mxu0 0
    %606 = vmatpush1.bf16.msra.mxu0 0
    %607 = vmatprep.subr.bf16.mxu0 0
    %608 = vmatpush1.bf16.msra.mxu0 0
    %609 = vmatprep.subr.bf16.mxu0 0
    %610 = vmatpush1.bf16.msra.mxu0 0
    %611 = vmatprep.subr.bf16.mxu0 0
    %612 = vmatpush1.bf16.msra.mxu0 0
    %613 = vmatprep.subr.bf16.mxu0 0
    %614 = vmatpush1.bf16.msra.mxu0 0
    %615 = vmatprep.subr.bf16.mxu0 0
    %616 = vmatpush1.bf16.msra.mxu0 0
    %617 = vmatprep.subr.bf16.mxu0 0
    %618 = vmatpush1.bf16.msra.mxu0 0
    %619 = vmatprep.subr.bf16.mxu0 0
    %620 = vmatpush1.bf16.msra.mxu0 0
    %621 = vmatprep.subr.bf16.mxu0 0
    %622 = vmatpush1.bf16.msra.mxu0 0
    %623 = vmatprep.subr.bf16.mxu0 0
    %624 = vmatpush1.bf16.msra.mxu0 0
    %625 = vmatprep.subr.bf16.mxu0 0
    %626 = vmatpush1.bf16.msra.mxu0 0
    %627 = vmatprep.subr.bf16.mxu0 0
    %628 = vmatpush1.bf16.msra.mxu0 0
    %629 = vmatprep.subr.bf16.mxu0 0
    %630 = vmatpush1.bf16.msra.mxu0 0
    %631 = vmatprep.mubr.bf16.mxu0 0
    %632 = vmatmul.mubr.bf16.gmra.mrb[0].mxu0 %v576
    %v633 = vpop.f32.mrb[0].mxu0
    %v634 = vadd.f32 %v560, %v633
    %v635 = vpop.f32.mrb[0].mxu0
    %v636 = vpop.f32.mrb[0].mxu0
    %v637 = vadd.f32 %v560, %v636
    %v638 = vpop.f32.mrb[0].mxu0
    %639 = vmatprep.mubr.bf16.mxu0 0
    %640 = vmatmul.mubr.bf16.gmra.mrb[0].mxu0 %v579
    %v641 = vpop.f32.mrb[0].mxu0
    %v642 = vadd.f32 %v560, %v641
    %v643 = vpop.f32.mrb[0].mxu0
    %v644 = vpop.f32.mrb[0].mxu0
    %v645 = vadd.f32 %v560, %v644
    %v646 = vpop.f32.mrb[0].mxu0
    %647 = vmatprep.mubr.bf16.mxu0 0
    %648 = vmatmul.mubr.bf16.gmra.mrb[0].mxu0 %v582
    %v649 = vpop.f32.mrb[0].mxu0
    %v650 = vadd.f32 %v560, %v649
    %v651 = vpop.f32.mrb[0].mxu0
    %v652 = vpop.f32.mrb[0].mxu0
    %v653 = vadd.f32 %v560, %v652
    %v654 = vpop.f32.mrb[0].mxu0
    %655 = vmatprep.mubr.bf16.mxu0 0
    %656 = vmatmul.mubr.bf16.gmra.mrb[0].mxu0 %v585
    %v657 = vpop.f32.mrb[0].mxu0
    %v658 = vadd.f32 %v560, %v657
    %v659 = vpop.f32.mrb[0].mxu0
    %v660 = vpop.f32.mrb[0].mxu0
    %v661 = vadd.f32 %v560, %v660
    %v662 = vpop.f32.mrb[0].mxu0
    %663 = vmatprep.mubr.bf16.mxu0 0
    %664 = vmatmul.mubr.bf16.gmra.mrb[0].mxu0 %v588
    %v665 = vpop.f32.mrb[0].mxu0
    %v666 = vadd.f32 %v560, %v665
    %v667 = vpop.f32.mrb[0].mxu0
    %v668 = vpop.f32.mrb[0].mxu0
    %v669 = vadd.f32 %v560, %v668
    %v670 = vpop.f32.mrb[0].mxu0
    %671 = vmatprep.mubr.bf16.mxu0 0
    %672 = vmatmul.mubr.bf16.gmra.mrb[0].mxu0 %v591
    %v673 = vpop.f32.mrb[0].mxu0
    %v674 = vadd.f32 %v560, %v673
    %v675 = vpop.f32.mrb[0].mxu0
    %v676 = vpop.f32.mrb[0].mxu0
    %v677 = vadd.f32 %v560, %v676
    %v678 = vpop.f32.mrb[0].mxu0
    %679 = vmatprep.mubr.bf16.mxu0 0
    %680 = vmatmul.mubr.bf16.gmra.mrb[0].mxu0 %v594
    %v681 = vpop.f32.mrb[0].mxu0
    %v682 = vadd.f32 %v560, %v681
    %v683 = vpop.f32.mrb[0].mxu0
    %v684 = vpop.f32.mrb[0].mxu0
    %v685 = vadd.f32 %v560, %v684
    %v686 = vpop.f32.mrb[0].mxu0
    %687 = vmatprep.mubr.bf16.mxu0 0
    %688 = vmatmul.mubr.bf16.gmra.mrb[0].mxu0 %v597
    %v689 = vpop.f32.mrb[0].mxu0
    %v690 = vadd.f32 %v560, %v689
    %v691 = vpop.f32.mrb[0].mxu0
    %v692 = vpop.f32.mrb[0].mxu0
    %v693 = vadd.f32 %v560, %v692
    %v694 = vpop.f32.mrb[0].mxu0
    %695 = vdwg.mxu0
    %v696 = vmax.f32 %v634, 0.0
    %v697 = vmax.f32 %v637, 0.0
    %v698 = vmax.f32 %v642, 0.0
    %v699 = vmax.f32 %v645, 0.0
    %v700 = vmax.f32 %v650, 0.0
    %v701 = vmax.f32 %v653, 0.0
    %v702 = vmax.f32 %v658, 0.0
    %v703 = vmax.f32 %v661, 0.0
    %v704 = vmax.f32 %v666, 0.0
    %v705 = vmax.f32 %v669, 0.0
    %v706 = vmax.f32 %v674, 0.0
    %v707 = vmax.f32 %v677, 0.0
    %v708 = vmax.f32 %v682, 0.0
    %v709 = vmax.f32 %v685, 0.0
    %v710 = vmax.f32 %v690, 0.0
    %v711 = vmax.f32 %v693, 0.0
    %v712 = vpack.c.bf16 %v697, %v696
    %v713 = vpack.c.bf16 %v699, %v698
    %v714 = vpack.c.bf16 %v701, %v700
    %v715 = vpack.c.bf16 %v703, %v702
    %v716 = vpack.c.bf16 %v705, %v704
    %v717 = vpack.c.bf16 %v707, %v706
    %v718 = vpack.c.bf16 %v709, %v708
    %v719 = vpack.c.bf16 %v711, %v710
    %v720 = vld [vmem:[%s7] sm:$0xf]
    %v721 = vld [vmem:[%s7 + $0x4] sm:$0xf]
    %v722 = vld [vmem:[%s7 + $0x8] sm:$0xf]
    %v723 = vld [vmem:[%s7 + $0xc] sm:$0xf]
    %v724 = vld [vmem:[%s8] sm:$0x1]
    %v726 = vlaneseq
    %v727 = vshrl.u32 %v726, 7
    %v728 = vsub.s32 0, %v727
    %v729 = vrot.slane %v724, %v728
    %v735 = vunpack.c.l.b16 %v720
    %v736 = vunpack.c.l.b16 %v721
    %v737 = vunpack.c.l.b16 %v722
    %v738 = vunpack.c.l.b16 %v723
    %v739 = vpack.c.b16 %v736, %v735
    %v740 = vpack.c.b16 %v738, %v737
    %v744 = vsel %vm574, %v712, 0
    %v747 = vsel %vm574, %v713, 0
    %v750 = vsel %vm574, %v714, 0
    %v753 = vsel %vm574, %v715, 0
    %v756 = vsel %vm574, %v716, 0
    %v759 = vsel %vm574, %v717, 0
    %v762 = vsel %vm574, %v718, 0
    %v765 = vsel %vm574, %v719, 0
    %767 = vmatprep.subr.bf16.mxu0 0
    %768 = vmatpush1.bf16.msra.mxu0 %v739
    %769 = vmatprep.subr.bf16.mxu0 0
    %770 = vmatpush1.bf16.msra.mxu0 %v740
    %771 = vmatprep.subr.bf16.mxu0 0
    %772 = vmatpush1.bf16.msra.mxu0 0
    %773 = vmatprep.subr.bf16.mxu0 0
    %774 = vmatpush1.bf16.msra.mxu0 0
    %775 = vmatprep.subr.bf16.mxu0 0
    %776 = vmatpush1.bf16.msra.mxu0 0
    %777 = vmatprep.subr.bf16.mxu0 0
    %778 = vmatpush1.bf16.msra.mxu0 0
    %779 = vmatprep.subr.bf16.mxu0 0
    %780 = vmatpush1.bf16.msra.mxu0 0
    %781 = vmatprep.subr.bf16.mxu0 0
    %782 = vmatpush1.bf16.msra.mxu0 0
    %783 = vmatprep.subr.bf16.mxu0 0
    %784 = vmatpush1.bf16.msra.mxu0 0
    %785 = vmatprep.subr.bf16.mxu0 0
    %786 = vmatpush1.bf16.msra.mxu0 0
    %787 = vmatprep.subr.bf16.mxu0 0
    %788 = vmatpush1.bf16.msra.mxu0 0
    %789 = vmatprep.subr.bf16.mxu0 0
    %790 = vmatpush1.bf16.msra.mxu0 0
    %791 = vmatprep.subr.bf16.mxu0 0
    %792 = vmatpush1.bf16.msra.mxu0 0
    %793 = vmatprep.subr.bf16.mxu0 0
    %794 = vmatpush1.bf16.msra.mxu0 0
    %795 = vmatprep.subr.bf16.mxu0 0
    %796 = vmatpush1.bf16.msra.mxu0 0
    %797 = vmatprep.subr.bf16.mxu0 0
    %798 = vmatpush1.bf16.msra.mxu0 0
    %799 = vmatprep.mubr.bf16.mxu0 0
    %800 = vmatmul.mubr.bf16.gmra.mrb[0].mxu0 %v744
    %v801 = vpop.f32.mrb[0].mxu0
    %v802 = vadd.f32 %v729, %v801
    %v803 = vpop.f32.mrb[0].mxu0
    %v804 = vpop.f32.mrb[0].mxu0
    %v805 = vadd.f32 %v729, %v804
    %v806 = vpop.f32.mrb[0].mxu0
    %807 = vmatprep.mubr.bf16.mxu0 0
    %808 = vmatmul.mubr.bf16.gmra.mrb[0].mxu0 %v747
    %v809 = vpop.f32.mrb[0].mxu0
    %v810 = vadd.f32 %v729, %v809
    %v811 = vpop.f32.mrb[0].mxu0
    %v812 = vpop.f32.mrb[0].mxu0
    %v813 = vadd.f32 %v729, %v812
    %v814 = vpop.f32.mrb[0].mxu0
    %815 = vmatprep.mubr.bf16.mxu0 0
    %816 = vmatmul.mubr.bf16.gmra.mrb[0].mxu0 %v750
    %v817 = vpop.f32.mrb[0].mxu0
    %v818 = vadd.f32 %v729, %v817
    %v819 = vpop.f32.mrb[0].mxu0
    %v820 = vpop.f32.mrb[0].mxu0
    %v821 = vadd.f32 %v729, %v820
    %v822 = vpop.f32.mrb[0].mxu0
    %823 = vmatprep.mubr.bf16.mxu0 0
    %824 = vmatmul.mubr.bf16.gmra.mrb[0].mxu0 %v753
    %v825 = vpop.f32.mrb[0].mxu0
    %v826 = vadd.f32 %v729, %v825
    %v827 = vpop.f32.mrb[0].mxu0
    %v828 = vpop.f32.mrb[0].mxu0
    %v829 = vadd.f32 %v729, %v828
    %v830 = vpop.f32.mrb[0].mxu0
    %831 = vmatprep.mubr.bf16.mxu0 0
    %832 = vmatmul.mubr.bf16.gmra.mrb[0].mxu0 %v756
    %v833 = vpop.f32.mrb[0].mxu0
    %v834 = vadd.f32 %v729, %v833
    %v835 = vpop.f32.mrb[0].mxu0
    %v836 = vpop.f32.mrb[0].mxu0
    %v837 = vadd.f32 %v729, %v836
    %v838 = vpop.f32.mrb[0].mxu0
    %839 = vmatprep.mubr.bf16.mxu0 0
    %840 = vmatmul.mubr.bf16.gmra.mrb[0].mxu0 %v759
    %v841 = vpop.f32.mrb[0].mxu0
    %v842 = vadd.f32 %v729, %v841
    %v843 = vpop.f32.mrb[0].mxu0
    %v844 = vpop.f32.mrb[0].mxu0
    %v845 = vadd.f32 %v729, %v844
    %v846 = vpop.f32.mrb[0].mxu0
    %847 = vmatprep.mubr.bf16.mxu0 0
    %848 = vmatmul.mubr.bf16.gmra.mrb[0].mxu0 %v762
    %v849 = vpop.f32.mrb[0].mxu0
    %v850 = vadd.f32 %v729, %v849
    %v851 = vpop.f32.mrb[0].mxu0
    %v852 = vpop.f32.mrb[0].mxu0
    %v853 = vadd.f32 %v729, %v852
    %v854 = vpop.f32.mrb[0].mxu0
    %855 = vmatprep.mubr.bf16.mxu0 0
    %856 = vmatmul.mubr.bf16.gmra.mrb[0].mxu0 %v765
    %v857 = vpop.f32.mrb[0].mxu0
    %v858 = vadd.f32 %v729, %v857
    %v859 = vpop.f32.mrb[0].mxu0
    %v860 = vpop.f32.mrb[0].mxu0
    %v861 = vadd.f32 %v729, %v860
    %v862 = vpop.f32.mrb[0].mxu0
    %863 = vdwg.mxu0
    %v864 = vmax.f32 %v802, 0.0
    %v865 = vmax.f32 %v805, 0.0
    %v866 = vmax.f32 %v810, 0.0
    %v867 = vmax.f32 %v813, 0.0
    %v868 = vmax.f32 %v818, 0.0
    %v869 = vmax.f32 %v821, 0.0
    %v870 = vmax.f32 %v826, 0.0
    %v871 = vmax.f32 %v829, 0.0
    %v872 = vmax.f32 %v834, 0.0
    %v873 = vmax.f32 %v837, 0.0
    %v874 = vmax.f32 %v842, 0.0
    %v875 = vmax.f32 %v845, 0.0
    %v876 = vmax.f32 %v850, 0.0
    %v877 = vmax.f32 %v853, 0.0
    %v878 = vmax.f32 %v858, 0.0
    %v879 = vmax.f32 %v861, 0.0
    %v880 = vld [vmem:[%s4] sm:$0x1]
    %v881 = vlaneseq
    %v882 = vshrl.u32 %v881, 7
    %v883 = vlaneseq
    %v884 = vshrl.u32 %v883, 7
    %v885 = vsub.s32 0, %v884
    %v886 = vrot.slane %v880, %v885
    %vm887 = vcmp.eq.s32.totalorder %v886, %v882
    %v888 = vsel %vm887, 1, 0
    %v889 = vcvt.s32.f32 %v888
    %v890 = vpack.c.bf16 %v889, %v889
    %v891 = vpack.c.bf16 %v865, %v864
    %v892 = vpack.c.bf16 %v867, %v866
    %v893 = vpack.c.bf16 %v869, %v868
    %v894 = vpack.c.bf16 %v871, %v870
    %v895 = vpack.c.bf16 %v873, %v872
    %v896 = vpack.c.bf16 %v875, %v874
    %v897 = vpack.c.bf16 %v877, %v876
    %v898 = vpack.c.bf16 %v879, %v878
    %899 = vmatprep.subr.bf16.mxu0 0
    %900 = vmatpush1.bf16.msra.mxu0 %v891
    %901 = vmatprep.subr.bf16.mxu0 0
    %902 = vmatpush1.bf16.msra.mxu0 %v892
    %903 = vmatprep.subr.bf16.mxu0 0
    %904 = vmatpush1.bf16.msra.mxu0 %v893
    %905 = vmatprep.subr.bf16.mxu0 0
    %906 = vmatpush1.bf16.msra.mxu0 %v894
    %907 = vmatprep.subr.bf16.mxu0 0
    %908 = vmatpush1.bf16.msra.mxu0 %v895
    %909 = vmatprep.subr.bf16.mxu0 0
    %910 = vmatpush1.bf16.msra.mxu0 %v896
    %911 = vmatprep.subr.bf16.mxu0 0
    %912 = vmatpush1.bf16.msra.mxu0 %v897
    %913 = vmatprep.subr.bf16.mxu0 0
    %914 = vmatpush1.bf16.msra.mxu0 %v898
    %915 = vmatprep.subr.bf16.mxu0 0
    %916 = vmatpush1.bf16.msra.mxu0 0
    %917 = vmatprep.subr.bf16.mxu0 0
    %918 = vmatpush1.bf16.msra.mxu0 0
    %919 = vmatprep.subr.bf16.mxu0 0
    %920 = vmatpush1.bf16.msra.mxu0 0
    %921 = vmatprep.subr.bf16.mxu0 0
    %922 = vmatpush1.bf16.msra.mxu0 0
    %923 = vmatprep.subr.bf16.mxu0 0
    %924 = vmatpush1.bf16.msra.mxu0 0
    %925 = vmatprep.subr.bf16.mxu0 0
    %926 = vmatpush1.bf16.msra.mxu0 0
    %927 = vmatprep.subr.bf16.mxu0 0
    %928 = vmatpush1.bf16.msra.mxu0 0
    %929 = vmatprep.subr.bf16.mxu0 0
    %930 = vmatpush1.bf16.msra.mxu0 0
    %931 = vmatprep.mubr.bf16.mxu0 0
    %932 = vmatmul.mubr.bf16.gmra.mrb[0].mxu0 %v890
    %v933 = vpop.f32.mrb[0].mxu0
    %v934 = vadd.f32 0.0, %v933
    %v935 = vpop.f32.mrb[0].mxu0
    %v936 = vpop.f32.mrb[0].mxu0
    %v937 = vpop.f32.mrb[0].mxu0
    %938 = vdwg.mxu0
    %vm939 = vcmask 254976
    %940 = vst.msk [vmem:[%s9] sm:$0x3] %vm939, %v934
  $region45: #{gin_test_forward.2} parent=0 // pred_fallthru
    _
  // Predicated region
  $region46: #{gin_test_forward.2} parent=0 // pred_check
    _
  $region47: #{gin_test_forward.2} parent=0 // pred_check_branch
    %942 = sbr.rel (0) target = $region49
  $region48: #{gin_test_forward.2} parent=0 // pred_region
    _
  $region49: #{gin_test_forward.2} parent=0 // pred_fallthru
    _
  // Predicated region
  $region50: #{gin_test_forward.2} parent=0 // pred_check
    _
  $region51: #{gin_test_forward.2} parent=0 // pred_check_branch
    %944 = sbr.rel (0) target = $region53
  $region52: #{gin_test_forward.2} parent=0 // pred_region
    _
  $region53: #{gin_test_forward.2} parent=0 // pred_fallthru
    _

</llo_original>
